<compile_context>
chip_gen: v7x
topology: tpu7x:2x2x1
jax: 0.10.0
libtpu: 0.0.40
codegen_flags: <defaults>
</compile_context>

<pallas_src>
import numpy as np
import jax
import jax.numpy as jnp
from jax.experimental import pallas as pl
from jax.experimental.pallas import tpu as pltpu


def moe_group_kernel(block_expert_ref, block_active_ref,     # scalar prefetch (SMEM)
                     x_ref, rw_ref, wgu_ref, wd_ref,          # inputs
                     o_ref,                                    # output
                     acc_ref):                                 # f32 VMEM scratch
    """Grid = (row_block i [parallel], intermediate tile j [arbitrary])."""
    i = pl.program_id(0)
    j = pl.program_id(1)
    active = block_active_ref[i] > 0

    @pl.when(jnp.logical_and(active, j == 0))
    def _():
        acc_ref[...] = jnp.zeros_like(acc_ref)

    @pl.when(active)
    def _():
        xb = x_ref[...]                                                   # [BM, H] bf16
        # fused gate+up projection: one MXU dot, f32 accumulation
        gu = jnp.dot(xb, wgu_ref[...], preferred_element_type=jnp.float32)  # [BM, 2*tI]
        d = gu.shape[-1] // 2
        g = gu[:, :d]
        u = gu[:, d:]
        h = (g * jax.nn.sigmoid(g)) * u                                   # SiluAndMul, f32
        acc_ref[...] += jnp.dot(h.astype(wd_ref.dtype), wd_ref[...],
                                preferred_element_type=jnp.float32)       # [BM, H]

    @pl.when(j == pl.num_programs(1) - 1)
    def _():
        # single lane-dense writeback; routing weight applied in f32.
        # padding blocks write zeros (their rows are never gathered back anyway).
        o_ref[...] = jnp.where(active,
                               acc_ref[...] * rw_ref[...],
                               jnp.zeros_like(acc_ref)).astype(o_ref.dtype)


def prepare_llama_moe_weights(params, *, block_i=256):
    """One-time weight preparation (do NOT call per forward).

    Folds the dense base MLP in as pseudo-expert E, fuses gate/up per j-tile so the kernel
    needs a single dot, re-lays-out weights so the last two dims are lane-dense full tiles,
    and casts everything the kernel streams to bf16.
    Returns (gate_w [H,E] f32, w_gu [G, num_j, H, 2*tI] bf16, w_d [G, num_j, tI, H] bf16).
    """
    wgu_all = params["expert_gate_up"]                 # [E, H, 2I]
    wd_all = params["expert_down"]                     # [E, I, H]
    E, H, two_i = wgu_all.shape
    I = two_i // 2
    G = E + 1

    tI = min(block_i, I)
    assert I % tI == 0, "intermediate size must be a multiple of block_i"
    num_j = I // tI

    wgu = jnp.concatenate([wgu_all, params["base_gate_up"][None]], axis=0)   # [G, H, 2I]
    wd = jnp.concatenate([wd_all, params["base_down"][None]], axis=0)        # [G, I, H]

    # gate/up interleaved per j-tile -> a single [H, 2*tI] weight tile per grid step
    wg = wgu[:, :, :I].reshape(G, H, num_j, tI).transpose(0, 2, 1, 3)        # [G, nj, H, tI]
    wu = wgu[:, :, I:].reshape(G, H, num_j, tI).transpose(0, 2, 1, 3)        # [G, nj, H, tI]
    w_gu = jnp.concatenate([wg, wu], axis=-1).astype(jnp.bfloat16)           # [G, nj, H, 2tI]
    w_d = wd.reshape(G, num_j, tI, H).astype(jnp.bfloat16)                   # [G, nj, tI, H]

    return params["gate"], w_gu, w_d


def llama_moe_forward(x, gate_w, w_gu, w_d, *, experts_per_token, block_m=128):
    """x: [T, H]. gate_w/w_gu/w_d from prepare_llama_moe_weights. Returns [T, H]."""
    T, H = x.shape
    G, num_j, _, two_ti = w_gu.shape
    tI = two_ti // 2
    I = num_j * tI
    E = G - 1
    K = experts_per_token
    BM = block_m

    # ---- router (tiny matmul + topk/softmax kept in plain JAX) ----
    logits = x @ gate_w                                                # [T, E]
    top_w, top_i = jax.lax.top_k(logits, K)
    soft_w = jax.nn.softmax(top_w.astype(jnp.float32), axis=-1)        # [T, K] f32

    # ---- routed (token, expert) rows; base-MLP rows carry weight 1.0 ----
    row_expert = jnp.concatenate([top_i.astype(jnp.int32).reshape(-1),
                                  jnp.full((T,), E, jnp.int32)])        # [R]
    row_token = jnp.concatenate([jnp.repeat(jnp.arange(T, dtype=jnp.int32), K),
                                 jnp.arange(T, dtype=jnp.int32)])       # [R]
    row_weight = jnp.concatenate([soft_w.reshape(-1),
                                  jnp.ones((T,), jnp.float32)])         # [R] f32
    R = T * (K + 1)

    # ---- group by expert, pad each group to a multiple of BM (static worst-case total) ----
    counts = jnp.bincount(row_expert, length=G)                         # [G]
    g_pad = ((counts + BM - 1) // BM) * BM
    start_pad = jnp.concatenate([jnp.zeros((1,), g_pad.dtype), jnp.cumsum(g_pad)[:-1]])
    start_unpad = jnp.concatenate([jnp.zeros((1,), counts.dtype), jnp.cumsum(counts)[:-1]])

    order = jnp.argsort(row_expert)                                     # groups contiguous
    sorted_expert = row_expert[order]
    pos_in_group = jnp.arange(R, dtype=jnp.int32) - start_unpad[sorted_expert].astype(jnp.int32)
    dest = start_pad[sorted_expert].astype(jnp.int32) + pos_in_group    # unique padded slots

    R_pad = ((R + G * (BM - 1) + BM - 1) // BM) * BM                    # static upper bound
    num_blocks = R_pad // BM

    tok_pad = jnp.full((R_pad,), T, jnp.int32).at[dest].set(row_token[order])
    rw_pad = jnp.zeros((R_pad,), jnp.float32).at[dest].set(row_weight[order])

    x_ext = jnp.concatenate([x, jnp.zeros((1, H), x.dtype)], axis=0)    # dummy zero row
    x_sorted = x_ext[tok_pad].astype(jnp.bfloat16)                      # [R_pad, H] bf16

    # per-row-block expert id + active flag (scalar prefetch -> SMEM -> index_maps / body)
    ends = jnp.cumsum(g_pad)
    block_start = jnp.arange(num_blocks, dtype=jnp.int32) * BM
    block_expert = jnp.minimum(jnp.searchsorted(ends, block_start, side="right"),
                               G - 1).astype(jnp.int32)                  # [num_blocks]
    block_active = (block_start <
                    (start_pad[block_expert] + counts[block_expert]).astype(jnp.int32)
                    ).astype(jnp.int32)                                  # has >=1 real row

    # ---- cost / VMEM sizing (bf16 weight traffic, f32 output) ----
    cost = pl.CostEstimate(
        flops=6 * R_pad * H * I,
        transcendentals=R_pad * I,
        bytes_accessed=(R_pad * H * 2 + R_pad * 4 + R_pad * H * 4
                        + num_blocks * 3 * H * I * 2),
    )
    bytes_per_step = (BM * H * 2            # x tile (bf16)
                      + BM * 4              # routing weights
                      + H * 2 * tI * 2      # fused gate/up tile (bf16)
                      + tI * H * 2          # down tile (bf16)
                      + BM * H * 4)         # output tile (f32)
    vmem_limit = int(min(max(2 * bytes_per_step + BM * H * 4 + (4 << 20), 32 << 20),
                         64 << 20))         # cap at 64 MiB -> fits v7x physical VMEM

    y_rows = pl.pallas_call(
        moe_group_kernel,
        out_shape=jax.ShapeDtypeStruct((R_pad, H), x.dtype),
        grid_spec=pltpu.PrefetchScalarGridSpec(
            num_scalar_prefetch=2,
            grid=(num_blocks, num_j),
            in_specs=[
                pl.BlockSpec((BM, H), lambda i, j, be, act: (i, 0)),               # x rows
                pl.BlockSpec((BM, 1), lambda i, j, be, act: (i, 0)),               # f32 weights
                pl.BlockSpec((None, None, H, 2 * tI),
                             lambda i, j, be, act: (be[i], j, 0, 0)),              # gate+up tile
                pl.BlockSpec((None, None, tI, H),
                             lambda i, j, be, act: (be[i], j, 0, 0)),              # down tile
            ],
            out_specs=pl.BlockSpec((BM, H), lambda i, j, be, act: (i, 0)),
            scratch_shapes=[pltpu.VMEM((BM, H), jnp.float32)],
        ),
        compiler_params=pltpu.CompilerParams(
            dimension_semantics=("parallel", "arbitrary"),
            vmem_limit_bytes=vmem_limit),
        cost_estimate=cost,
    )(block_expert, block_active, x_sorted, rw_pad.reshape(R_pad, 1), w_gu, w_d)

    # ---- writeback: gather rows back into original (token-major) order + K-way sum ----
    # (dense gather + sum instead of XLA scatter-add; padding rows are never touched)
    inv_slot = jnp.zeros((R,), jnp.int32).at[order].set(dest)            # orig row -> slot
    y_unsorted = y_rows[inv_slot]                                        # [R, H]
    routed = y_unsorted[:T * K].reshape(T, K, H).sum(axis=1)             # weighted expert sum
    base = y_unsorted[T * K:]                                            # base MLP (weight 1)
    return (routed + base).astype(x.dtype)


def ref_forward(x, params, k):
    """Pure-JAX reference mirroring the PyTorch LlamaMoE semantics (dense formulation)."""
    def mlp(v, wgu, wd):
        gu = v @ wgu
        d = gu.shape[-1] // 2
        return (jax.nn.silu(gu[:, :d]) * gu[:, d:]) @ wd

    base = mlp(x, params["base_gate_up"], params["base_down"])
    logits = x @ params["gate"]
    top_w, top_i = jax.lax.top_k(logits, k)
    soft_w = jax.nn.softmax(top_w.astype(jnp.float32), axis=-1).astype(x.dtype)
    E = params["gate"].shape[1]
    dense_w = jnp.sum(jax.nn.one_hot(top_i, E, dtype=x.dtype) * soft_w[..., None], axis=1)
    out = jnp.zeros_like(x)
    for e in range(E):
        y = mlp(x, params["expert_gate_up"][e], params["expert_down"][e])
        out = out + dense_w[:, e:e + 1] * y
    return out + base


if __name__ == "__main__":
    # small shapes consistent with the module: hidden=128, intermediate=256,
    # 8 experts, top-2 routing, 16 tokens (2-D input path of LlamaMoE.forward).
    H, I, E, K, T = 128, 256, 8, 2, 16
    key = jax.random.PRNGKey(0)
    ks = jax.random.split(key, 6)
    scale = 0.05
    params = {
        "base_gate_up":   jax.random.normal(ks[0], (H, 2 * I), jnp.float32) * scale,
        "base_down":      jax.random.normal(ks[1], (I, H), jnp.float32) * scale,
        "expert_gate_up": jax.random.normal(ks[2], (E, H, 2 * I), jnp.float32) * scale,
        "expert_down":    jax.random.normal(ks[3], (E, I, H), jnp.float32) * scale,
        "gate":           jax.random.normal(ks[4], (H, E), jnp.float32) * scale,
    }
    x = jax.random.normal(ks[5], (T, H), jnp.float32)

    # one-time weight prep (base fold-in, gate/up fusion, bf16 cast, re-layout)
    gate_w, w_gu, w_d = prepare_llama_moe_weights(params, block_i=256)

    fwd = jax.jit(llama_moe_forward, static_argnames=("experts_per_token", "block_m"))
    out = fwd(x, gate_w, w_gu, w_d, experts_per_token=K)
    jax.block_until_ready(out)

    ref = ref_forward(x, params, K)
    np.testing.assert_allclose(np.asarray(out), np.asarray(ref), rtol=2e-2, atol=2e-2)
    print("KERNEL_OK")
</pallas_src>

<mosaic_0001>
module attributes {stable_mosaic.version = 11 : i64} {
  func.func private @main(%arg0: i32) attributes {dimension_semantics = [#tpu.dimension_semantics<core_parallel>], iteration_bounds = array<i64: 2>, tpu.core_type = #tpu.core_type<sc_scalar_subcore>, window_params = []} {
    return
  }
}

module attributes {stable_mosaic.version = 11 : i64} {
  func.func private @main(%arg0: i32) attributes {dimension_semantics = [#tpu.dimension_semantics<core_parallel>], iteration_bounds = array<i64: 2>, tpu.core_type = #tpu.core_type<sc_scalar_subcore>, window_params = []} {
    return
  }
}

module attributes {stable_mosaic.version = 11 : i64} {
  func.func @moe_group_kernel(%arg0: i32, %arg1: i32, %arg2: memref<10xi32, #tpu.memory_space<smem>>, %arg3: memref<10xi32, #tpu.memory_space<smem>>, %arg4: memref<128x128xbf16, #tpu.memory_space<vmem>>, %arg5: memref<128x1xf32, #tpu.memory_space<vmem>>, %arg6: memref<1x1x128x512xbf16, #tpu.memory_space<vmem>>, %arg7: memref<1x1x256x128xbf16, #tpu.memory_space<vmem>>, %arg8: memref<128x128xf32, #tpu.memory_space<vmem>>, %arg9: memref<128x128xf32, #tpu.memory_space<vmem>>) attributes {dimension_semantics = [#tpu.dimension_semantics<parallel>, #tpu.dimension_semantics<arbitrary>], iteration_bounds = array<i64: 10, 1>, scalar_prefetch = 2 : i64, scratch_operands = 1 : i64, tpu.core_type = #tpu.core_type<tc>, window_params = [{transform_indices = @transform_0, window_bounds = array<i64: 128, 128>}, {transform_indices = @transform_1, window_bounds = array<i64: 128, 1>}, {transform_indices = @transform_2, window_bounds = array<i64: 1, 1, 128, 512>}, {transform_indices = @transform_3, window_bounds = array<i64: 1, 1, 256, 128>}, {transform_indices = @transform_4, window_bounds = array<i64: 128, 128>}]} {
    %0 = arith.index_cast %arg0 : i32 to index
    %1 = memref.load %arg3[%0] : memref<10xi32, #tpu.memory_space<smem>>
    %c0_i32 = arith.constant 0 : i32
    %2 = arith.cmpi sgt, %1, %c0_i32 : i32
    %c0_i32_0 = arith.constant 0 : i32
    %3 = arith.cmpi eq, %arg1, %c0_i32_0 : i32
    %4 = arith.andi %2, %3 : i1
    %5 = arith.extui %4 : i1 to i32
    %c0_i32_1 = arith.constant 0 : i32
    %6 = arith.cmpi ne, %5, %c0_i32_1 : i32
    scf.if %6 {
      %cst = arith.constant 0.000000e+00 : f32
      %12 = vector.broadcast %cst : f32 to vector<128x128xf32>
      %c0 = arith.constant 0 : index
      %c0_5 = arith.constant 0 : index
      %13 = vector.load %arg9[%c0, %c0_5] : memref<128x128xf32, #tpu.memory_space<vmem>>, vector<128x128xf32>
      tpu.vector_store %arg9[%c0, %c0_5], %12 {strides = array<i32>} : memref<128x128xf32, #tpu.memory_space<vmem>>, vector<128x128xf32>,
    } else {
    }
    %7 = arith.extui %2 : i1 to i32
    %c0_i32_2 = arith.constant 0 : i32
    %8 = arith.cmpi ne, %7, %c0_i32_2 : i32
    scf.if %8 {
      %c0 = arith.constant 0 : index
      %c0_5 = arith.constant 0 : index
      %12 = vector.load %arg4[%c0, %c0_5] : memref<128x128xbf16, #tpu.memory_space<vmem>>, vector<128x128xbf16>
      %c0_6 = arith.constant 0 : index
      %c0_7 = arith.constant 0 : index
      %c0_8 = arith.constant 0 : index
      %c0_9 = arith.constant 0 : index
      %13 = vector.load %arg6[%c0_6, %c0_7, %c0_8, %c0_9] : memref<1x1x128x512xbf16, #tpu.memory_space<vmem>>, vector<1x1x128x512xbf16>
      %14 = vector.shape_cast %13 : vector<1x1x128x512xbf16> to vector<128x512xbf16>
      %cst = arith.constant dense<0.000000e+00> : vector<128x512xf32>
      %15 = tpu.matmul %12, %14, %cst {dimension_numbers = #tpu.dot_dimension_numbers<[1], [0], [0], [1], [0, 0, 1, 1], [], []>} : vector<128x128xbf16>, vector<128x512xbf16>, vector<128x512xf32> -> vector<128x512xf32>
      %16 = vector.extract_strided_slice %15 {offsets = [0, 0], sizes = [128, 256], strides = [1, 1]} : vector<128x512xf32> to vector<128x256xf32>
      %17 = vector.extract_strided_slice %15 {offsets = [0, 256], sizes = [128, 256], strides = [1, 1]} : vector<128x512xf32> to vector<128x256xf32>
      %18 = arith.negf %16 : vector<128x256xf32>
      %19 = math.exp %18 : vector<128x256xf32>
      %cst_10 = arith.constant 1.000000e+00 : f32
      %20 = vector.broadcast %cst_10 : f32 to vector<128x256xf32>
      %21 = arith.addf %20, %19 : vector<128x256xf32>
      %22 = arith.divf %20, %21 : vector<128x256xf32>
      %23 = arith.mulf %16, %22 : vector<128x256xf32>
      %24 = arith.mulf %23, %17 : vector<128x256xf32>
      %c0_11 = arith.constant 0 : index
      %c0_12 = arith.constant 0 : index
      %25 = vector.load %arg9[%c0_11, %c0_12] : memref<128x128xf32, #tpu.memory_space<vmem>>, vector<128x128xf32>
      %26 = arith.truncf %24 : vector<128x256xf32> to vector<128x256xbf16>
      %c0_13 = arith.constant 0 : index
      %c0_14 = arith.constant 0 : index
      %c0_15 = arith.constant 0 : index
      %c0_16 = arith.constant 0 : index
      %27 = vector.load %arg7[%c0_13, %c0_14, %c0_15, %c0_16] : memref<1x1x256x128xbf16, #tpu.memory_space<vmem>>, vector<1x1x256x128xbf16>
      %28 = vector.shape_cast %27 : vector<1x1x256x128xbf16> to vector<256x128xbf16>
      %cst_17 = arith.constant dense<0.000000e+00> : vector<128x128xf32>
      %29 = tpu.matmul %26, %28, %cst_17 {dimension_numbers = #tpu.dot_dimension_numbers<[1], [0], [0], [1], [0, 0, 1, 1], [], []>} : vector<128x256xbf16>, vector<256x128xbf16>, vector<128x128xf32> -> vector<128x128xf32>
      %30 = arith.addf %25, %29 : vector<128x128xf32>
      %c0_18 = arith.constant 0 : index
      %c0_19 = arith.constant 0 : index
      %31 = vector.load %arg9[%c0_18, %c0_19] : memref<128x128xf32, #tpu.memory_space<vmem>>, vector<128x128xf32>
      tpu.vector_store %arg9[%c0_18, %c0_19], %30 {strides = array<i32>} : memref<128x128xf32, #tpu.memory_space<vmem>>, vector<128x128xf32>,
    } else {
    }
    %c0_i32_3 = arith.constant 0 : i32
    %9 = arith.cmpi eq, %arg1, %c0_i32_3 : i32
    %10 = arith.extui %9 : i1 to i32
    %c0_i32_4 = arith.constant 0 : i32
    %11 = arith.cmpi ne, %10, %c0_i32_4 : i32
    scf.if %11 {
      %c0 = arith.constant 0 : index
      %c0_5 = arith.constant 0 : index
      %12 = vector.load %arg9[%c0, %c0_5] : memref<128x128xf32, #tpu.memory_space<vmem>>, vector<128x128xf32>
      %c0_6 = arith.constant 0 : index
      %c0_7 = arith.constant 0 : index
      %13 = vector.load %arg5[%c0_6, %c0_7] : memref<128x1xf32, #tpu.memory_space<vmem>>, vector<128x1xf32>
      %14 = vector.broadcast %13 : vector<128x1xf32> to vector<128x128xf32>
      %15 = arith.mulf %12, %14 : vector<128x128xf32>
      %cst = arith.constant 0.000000e+00 : f32
      %16 = vector.broadcast %cst : f32 to vector<128x128xf32>
      %17 = arith.select %2, %15, %16 : vector<128x128xf32>
      %c0_8 = arith.constant 0 : index
      %c0_9 = arith.constant 0 : index
      %18 = vector.load %arg8[%c0_8, %c0_9] : memref<128x128xf32, #tpu.memory_space<vmem>>, vector<128x128xf32>
      tpu.vector_store %arg8[%c0_8, %c0_9], %17 {strides = array<i32>} : memref<128x128xf32, #tpu.memory_space<vmem>>, vector<128x128xf32>,
    } else {
    }
    return
  }
  func.func @transform_0(%arg0: i32, %arg1: i32, %arg2: memref<10xi32, #tpu.memory_space<smem>>, %arg3: memref<10xi32, #tpu.memory_space<smem>>) -> (i32, i32) {
    %c0_i32 = arith.constant 0 : i32
    %c0_i32_0 = arith.constant 0 : i32
    return %arg0, %c0_i32 : i32, i32
  }
  func.func @transform_1(%arg0: i32, %arg1: i32, %arg2: memref<10xi32, #tpu.memory_space<smem>>, %arg3: memref<10xi32, #tpu.memory_space<smem>>) -> (i32, i32) {
    %c0_i32 = arith.constant 0 : i32
    %c0_i32_0 = arith.constant 0 : i32
    return %arg0, %c0_i32 : i32, i32
  }
  func.func @transform_2(%arg0: i32, %arg1: i32, %arg2: memref<10xi32, #tpu.memory_space<smem>>, %arg3: memref<10xi32, #tpu.memory_space<smem>>) -> (i32, i32, i32, i32) {
    %0 = arith.index_cast %arg0 : i32 to index
    %1 = memref.load %arg2[%0] : memref<10xi32, #tpu.memory_space<smem>>
    %c0_i32 = arith.constant 0 : i32
    %c0_i32_0 = arith.constant 0 : i32
    %c0_i32_1 = arith.constant 0 : i32
    return %1, %arg1, %c0_i32, %c0_i32_0 : i32, i32, i32, i32
  }
  func.func @transform_3(%arg0: i32, %arg1: i32, %arg2: memref<10xi32, #tpu.memory_space<smem>>, %arg3: memref<10xi32, #tpu.memory_space<smem>>) -> (i32, i32, i32, i32) {
    %0 = arith.index_cast %arg0 : i32 to index
    %1 = memref.load %arg2[%0] : memref<10xi32, #tpu.memory_space<smem>>
    %c0_i32 = arith.constant 0 : i32
    %c0_i32_0 = arith.constant 0 : i32
    %c0_i32_1 = arith.constant 0 : i32
    return %1, %arg1, %c0_i32, %c0_i32_0 : i32, i32, i32, i32
  }
  func.func @transform_4(%arg0: i32, %arg1: i32, %arg2: memref<10xi32, #tpu.memory_space<smem>>, %arg3: memref<10xi32, #tpu.memory_space<smem>>) -> (i32, i32) {
    %c0_i32 = arith.constant 0 : i32
    %c0_i32_0 = arith.constant 0 : i32
    return %arg0, %c0_i32 : i32, i32
  }
}

</mosaic_0001>

<llo_original>
// kernel: custom-call
$region0: #{custom-call}
  %s0 = inlined_call_operand.vmem [shape: u32[10], index: 0, kind: output, shape index: {}]

// kernel: llama_moe_forward.1
$region0: #{llama_moe_forward.1}
  #allocation0 [shape = 'u32[]', space=smem, size = 0x4, offset = 0x4, fixed_abs, tag = 'smem constant byte address 0x4 - core index']
  #allocation1 [shape = 'u32[144,128]{1,0:T(1,128)}', space=vmem, size = 0x12000, scoped, tag = 'internal scratch']
  #allocation2 [shape = 'f32[128,128]{1,0:T(8,128)}', space=vmem, size = 0x10000, scoped, tag = 'scratch operand']
  #allocation3 [shape = 's32[1]{0}', space=sflag, size = 0x4, scoped, tag = 'scoped memory for llama_moe_forward.1']
  #allocation4 [shape = 'u8[512]{0}', space=smem, size = 0x200, scoped, tag = 'prefetched SMEM operand 0']
  #allocation5 [shape = 'u8[512]{0}', space=smem, size = 0x200, scoped, tag = 'prefetched SMEM operand 1']
  %s0 = inlined_call_operand.vmem [shape: s32[10], index: 0, kind: input, shape index: {}]
  %s1 = inlined_call_operand.vmem [shape: s32[10], index: 1, kind: input, shape index: {}]
  %s2 = inlined_call_operand.vmem [shape: bf16[1280,128], index: 2, kind: input, shape index: {}]
  %s3 = inlined_call_operand.vmem [shape: f32[1280,1], index: 3, kind: input, shape index: {}]
  %s4 = inlined_call_operand.vmem [shape: bf16[9,1,128,512], index: 4, kind: input, shape index: {}]
  %s5 = inlined_call_operand.vmem [shape: bf16[9,1,256,128], index: 5, kind: input, shape index: {}]
  %s6 = inlined_call_operand.vmem [shape: f32[1280,128], index: 6, kind: output, shape index: {}]
  %s7 = sld [smem:[#allocation0]]
  $region61: #{llama_moe_forward.1} parent=0
    _
  %s9 = ssub.s32 1, %s7
  %s10 = scalar_select 0, %s9, %s7
  %s11 = sshll.u32 %s0, 4
  %s12 = int_to_ptr.vmem [resolvable:$true] %s11
  %14 = dma.vmem_to_smem %s12, 16, [#allocation4], [#allocation3]
  %s15 = sshll.u32 %s1, 4
  %s16 = int_to_ptr.vmem [resolvable:$true] %s15
  %18 = dma.vmem_to_smem %s16, 16, [#allocation5], [#allocation3]
  %19 = dma.done [#allocation3], 32
  %20 = sfence
  loop: start=0, step=1, limit=12
  $region2: #{llama_moe_forward.1} parent=0 // loop_pre_header
    _
  $region3: #{llama_moe_forward.1} parent=0 // loop_header
    %s22 = sphi 0, %s26
    %p23 = scmp.ge.s32.totalorder %s22, 12
    %s29 = sphi 0, %s41
    %s30 = sphi 0, %s37
    %s31 = sphi 0, %s29
    %s32 = sphi 0, %s30
    %s33 = sphi 0, %s31
    %s34 = sphi 0, %s32
    %s44 = sphi 0, %s46
    %s47 = sphi 0, %s44
    %s48 = sphi 0, %s47
    %s64 = sphi 0, %s48
    %s70 = sphi 0, %s72
    %s73 = sphi 0, %s70
    %s74 = sphi 0, %s73
    %s90 = sphi 0, %s74
    %s100 = sphi 0, %s102
    %s103 = sphi 0, %s100
    %s104 = sphi 0, %s103
    %s120 = sphi 0, %s104
    %s130 = sphi 0, %s132
    %s133 = sphi 0, %s130
    %s134 = sphi 0, %s133
    %s150 = sphi 0, %s134
    %s156 = sphi 0, %s158
    %s159 = sphi 0, %s156
    %s160 = sphi 0, %s159
    %s176 = sphi 0, %s160
  $region4: #{llama_moe_forward.1} parent=0 // loop_header_branch
    %25 = sbr.rel (%p23) target = $region8
  $region5: #{llama_moe_forward.1} parent=0 // loop_body
    %s27 = ssub.s32 %s22, 1
    %s28 = ssub.s32 %s22, 2
    %s35 = sadd.s32 1, %s30
    %p36 = scmp.ge.s32.totalorder %s35, 1
    %s37 = scalar_select %p36, 0, %s35
    %s38 = sadd.s32 1, %s29
    %s39 = scalar_select %p36, %s38, %s29
    %p40 = scmp.ge.s32.totalorder %s39, 10
    %s41 = scalar_select %p40, 0, %s39
    %s42 = ssub.s32 %s29, %s41
    %p43 = scmp.eq.s32.totalorder %s42, 0
    %s45 = sadd.s32 %s44, 1
    %s46 = scalar_select %p43, %s44, %s45
    %p49 = pneg %p43
    %p50 = scmp.eq.s32.totalorder %s22, 9
    %p51 = por %p49, %p50
    %p52 = scmp.ne.s32.totalorder %s44, %s47
    %p53 = scmp.eq.s32.totalorder %s22, 0
    %p54 = por %p52, %p53
    %p55 = scmp.ne.s32.totalorder %s44, %s47
    %p56 = scmp.eq.s32.totalorder %s27, 9
    %p57 = por %p55, %p56
    %p58 = scmp.ne.s32.totalorder %s47, %s48
    %p59 = scmp.eq.s32.totalorder %s27, 0
    %p60 = por %p58, %p59
    %p61 = scmp.ne.s32.totalorder %s47, %s48
    %p62 = scmp.eq.s32.totalorder %s28, 9
    %p63 = por %p61, %p62
    %p65 = scmp.ne.s32.totalorder %s48, %s64
    %p66 = scmp.eq.s32.totalorder %s28, 0
    %p67 = por %p65, %p66
    %s68 = ssub.s32 %s29, %s41
    %p69 = scmp.eq.s32.totalorder %s68, 0
    %s71 = sadd.s32 %s70, 1
    %s72 = scalar_select %p69, %s70, %s71
    %p75 = pneg %p69
    %p76 = scmp.eq.s32.totalorder %s22, 9
    %p77 = por %p75, %p76
    %p78 = scmp.ne.s32.totalorder %s70, %s73
    %p79 = scmp.eq.s32.totalorder %s22, 0
    %p80 = por %p78, %p79
    %p81 = scmp.ne.s32.totalorder %s70, %s73
    %p82 = scmp.eq.s32.totalorder %s27, 9
    %p83 = por %p81, %p82
    %p84 = scmp.ne.s32.totalorder %s73, %s74
    %p85 = scmp.eq.s32.totalorder %s27, 0
    %p86 = por %p84, %p85
    %p87 = scmp.ne.s32.totalorder %s73, %s74
    %p88 = scmp.eq.s32.totalorder %s28, 9
    %p89 = por %p87, %p88
    %p91 = scmp.ne.s32.totalorder %s74, %s90
    %p92 = scmp.eq.s32.totalorder %s28, 0
    %p93 = por %p91, %p92
    %s94 = sld [smem:[#allocation4 + %s29]]
    %s95 = sld [smem:[#allocation4 + %s41]]
    %s96 = ssub.s32 %s94, %s95
    %s97 = ssub.s32 %s30, %s37
    %s98 = sor.u32 %s96, %s97
    %p99 = scmp.eq.s32.totalorder %s98, 0
    %s101 = sadd.s32 %s100, 1
    %s102 = scalar_select %p99, %s100, %s101
    %p105 = pneg %p99
    %p106 = scmp.eq.s32.totalorder %s22, 9
    %p107 = por %p105, %p106
    %p108 = scmp.ne.s32.totalorder %s100, %s103
    %p109 = scmp.eq.s32.totalorder %s22, 0
    %p110 = por %p108, %p109
    %p111 = scmp.ne.s32.totalorder %s100, %s103
    %p112 = scmp.eq.s32.totalorder %s27, 9
    %p113 = por %p111, %p112
    %p114 = scmp.ne.s32.totalorder %s103, %s104
    %p115 = scmp.eq.s32.totalorder %s27, 0
    %p116 = por %p114, %p115
    %p117 = scmp.ne.s32.totalorder %s103, %s104
    %p118 = scmp.eq.s32.totalorder %s28, 9
    %p119 = por %p117, %p118
    %p121 = scmp.ne.s32.totalorder %s104, %s120
    %p122 = scmp.eq.s32.totalorder %s28, 0
    %p123 = por %p121, %p122
    %s124 = sld [smem:[#allocation4 + %s29]]
    %s125 = sld [smem:[#allocation4 + %s41]]
    %s126 = ssub.s32 %s124, %s125
    %s127 = ssub.s32 %s30, %s37
    %s128 = sor.u32 %s126, %s127
    %p129 = scmp.eq.s32.totalorder %s128, 0
    %s131 = sadd.s32 %s130, 1
    %s132 = scalar_select %p129, %s130, %s131
    %p135 = pneg %p129
    %p136 = scmp.eq.s32.totalorder %s22, 9
    %p137 = por %p135, %p136
    %p138 = scmp.ne.s32.totalorder %s130, %s133
    %p139 = scmp.eq.s32.totalorder %s22, 0
    %p140 = por %p138, %p139
    %p141 = scmp.ne.s32.totalorder %s130, %s133
    %p142 = scmp.eq.s32.totalorder %s27, 9
    %p143 = por %p141, %p142
    %p144 = scmp.ne.s32.totalorder %s133, %s134
    %p145 = scmp.eq.s32.totalorder %s27, 0
    %p146 = por %p144, %p145
    %p147 = scmp.ne.s32.totalorder %s133, %s134
    %p148 = scmp.eq.s32.totalorder %s28, 9
    %p149 = por %p147, %p148
    %p151 = scmp.ne.s32.totalorder %s134, %s150
    %p152 = scmp.eq.s32.totalorder %s28, 0
    %p153 = por %p151, %p152
    %s154 = ssub.s32 %s29, %s41
    %p155 = scmp.eq.s32.totalorder %s154, 0
    %s157 = sadd.s32 %s156, 1
    %s158 = scalar_select %p155, %s156, %s157
    %p161 = pneg %p155
    %p162 = scmp.eq.s32.totalorder %s22, 9
    %p163 = por %p161, %p162
    %p164 = scmp.ne.s32.totalorder %s156, %s159
    %p165 = scmp.eq.s32.totalorder %s22, 0
    %p166 = por %p164, %p165
    %p167 = scmp.ne.s32.totalorder %s156, %s159
    %p168 = scmp.eq.s32.totalorder %s27, 9
    %p169 = por %p167, %p168
    %p170 = scmp.ne.s32.totalorder %s159, %s160
    %p171 = scmp.eq.s32.totalorder %s27, 0
    %p172 = por %p170, %p171
    %p173 = scmp.ne.s32.totalorder %s159, %s160
    %p174 = scmp.eq.s32.totalorder %s28, 9
    %p175 = por %p173, %p174
    %p177 = scmp.ne.s32.totalorder %s160, %s176
    %p178 = scmp.eq.s32.totalorder %s28, 0
    %p179 = por %p177, %p178
    %p180 = scmp.le.s32.totalorder 1, %s22
    %p181 = scmp.lt.s32.totalorder %s22, 11
    %p182 = pnand %p180, %p181
    %p183 = pneg %p182
    // Predicated region
    $region9: #{llama_moe_forward.1} parent=5 // pred_check
      _
    $region10: #{llama_moe_forward.1} parent=5 // pred_check_branch
      %185 = sbr.rel (%p182) target = $region12
    $region11: #{llama_moe_forward.1} parent=5 // pred_region
      %s186 = ssub.s32 %s22, 1
    $region12: #{llama_moe_forward.1} parent=5 // pred_fallthru
      _
    %p187 = scmp.lt.s32.totalorder %s22, 10
    // Predicated region
    $region13: #{llama_moe_forward.1} parent=5 // pred_check
      %p188 = pneg %p187
    $region14: #{llama_moe_forward.1} parent=5 // pred_check_branch
      %190 = sbr.rel (%p188) target = $region16
    $region15: #{llama_moe_forward.1} parent=5 // pred_region
      // Predicated region
      $region17: #{llama_moe_forward.1} parent=15 // pred_check
        %p191 = pneg %p54
      $region18: #{llama_moe_forward.1} parent=15 // pred_check_branch
        %193 = sbr.rel (%p191) target = $region20
      $region19: #{llama_moe_forward.1} parent=15 // pred_region
        %s194 = smul.u32 16, %s29
        %p195 = scmp.lt.s32.totalorder %s194, 159
        %s196 = scalar_select %p195, %s194, 159
        %s197 = smul.addr %s196, 4
        %s198 = scalar_lea.vmem %s2, %s197
        %s199 = smul.u32 16, %s29
      $region20: #{llama_moe_forward.1} parent=15 // pred_fallthru
        _
      // Predicated region
      $region21: #{llama_moe_forward.1} parent=15 // pred_check
        %p200 = pneg %p80
      $region22: #{llama_moe_forward.1} parent=15 // pred_check_branch
        %202 = sbr.rel (%p200) target = $region24
      $region23: #{llama_moe_forward.1} parent=15 // pred_region
        %s203 = smul.u32 16, %s29
        %p204 = scmp.lt.s32.totalorder %s203, 159
        %s205 = scalar_select %p204, %s203, 159
        %s206 = smul.addr %s205, 8
        %s207 = scalar_lea.vmem %s3, %s206
        %s208 = smul.u32 16, %s29
      $region24: #{llama_moe_forward.1} parent=15 // pred_fallthru
        _
      // Predicated region
      $region25: #{llama_moe_forward.1} parent=15 // pred_check
        %p209 = pneg %p110
      $region26: #{llama_moe_forward.1} parent=15 // pred_check_branch
        %211 = sbr.rel (%p209) target = $region28
      $region27: #{llama_moe_forward.1} parent=15 // pred_region
        %s212 = sld [smem:[#allocation4 + %s29]]
        %p213 = scmp.lt.s32.totalorder %s212, 8
        %s214 = scalar_select %p213, %s212, 8
        %p215 = scmp.lt.s32.totalorder %s30, 0
        %s216 = scalar_select %p215, %s30, 0
        %s217 = smul.addr %s216, 64
        %s218 = smul.addr %s214, 64
        %s219 = sadd.s32 %s217, %s218
        %s220 = smul.addr %s219, 4
        %s221 = scalar_lea.vmem %s4, %s220
        %s222 = sld [smem:[#allocation4 + %s29]]
      $region28: #{llama_moe_forward.1} parent=15 // pred_fallthru
        _
      // Predicated region
      $region29: #{llama_moe_forward.1} parent=15 // pred_check
        %p223 = pneg %p140
      $region30: #{llama_moe_forward.1} parent=15 // pred_check_branch
        %225 = sbr.rel (%p223) target = $region32
      $region31: #{llama_moe_forward.1} parent=15 // pred_region
        %s226 = sld [smem:[#allocation4 + %s29]]
        %p227 = scmp.lt.s32.totalorder %s226, 8
        %s228 = scalar_select %p227, %s226, 8
        %p229 = scmp.lt.s32.totalorder %s30, 0
        %s230 = scalar_select %p229, %s30, 0
        %s231 = smul.addr %s230, 32
        %s232 = smul.addr %s228, 32
        %s233 = sadd.s32 %s231, %s232
        %s234 = smul.addr %s233, 4
        %s235 = scalar_lea.vmem %s5, %s234
        %s236 = sld [smem:[#allocation4 + %s29]]
      $region32: #{llama_moe_forward.1} parent=15 // pred_fallthru
        _
    $region16: #{llama_moe_forward.1} parent=5 // pred_fallthru
      _
    %p237 = scmp.le.s32.totalorder 1, %s22
    %p238 = scmp.lt.s32.totalorder %s22, 11
    %p239 = pnand %p237, %p238
    %p240 = pneg %p239
    // Predicated region
    $region33: #{llama_moe_forward.1} parent=5 // pred_check
      _
    $region34: #{llama_moe_forward.1} parent=5 // pred_check_branch
      %242 = sbr.rel (%p239) target = $region36
    $region35: #{llama_moe_forward.1} parent=5 // pred_region
      %s243 = ssub.s32 %s22, 1
      %s244 = smul.u32 16, %s31
      %p245 = scmp.lt.s32.totalorder %s244, 159
      %s246 = scalar_select %p245, %s244, 159
      %s247 = smul.addr %s246, 4
      %s248 = scalar_lea.vmem %s2, %s247
      %p249 = pneg %p60
      %p250 = pneg %p57
      %s251 = smul.u32 16, %s31
      %p252 = scmp.lt.s32.totalorder %s251, 159
      %s253 = scalar_select %p252, %s251, 159
      %s254 = smul.addr %s253, 8
      %s255 = scalar_lea.vmem %s3, %s254
      %p256 = pneg %p86
      %p257 = pneg %p83
      %s258 = sld [smem:[#allocation4 + %s31]]
      %p259 = scmp.lt.s32.totalorder %s258, 8
      %s260 = scalar_select %p259, %s258, 8
      %p261 = scmp.lt.s32.totalorder %s32, 0
      %s262 = scalar_select %p261, %s32, 0
      %s263 = smul.addr %s262, 64
      %s264 = smul.addr %s260, 64
      %s265 = sadd.s32 %s263, %s264
      %s266 = smul.addr %s265, 4
      %s267 = scalar_lea.vmem %s4, %s266
      %p268 = pneg %p116
      %p269 = pneg %p113
      %s270 = sld [smem:[#allocation4 + %s31]]
      %p271 = scmp.lt.s32.totalorder %s270, 8
      %s272 = scalar_select %p271, %s270, 8
      %p273 = scmp.lt.s32.totalorder %s32, 0
      %s274 = scalar_select %p273, %s32, 0
      %s275 = smul.addr %s274, 32
      %s276 = smul.addr %s272, 32
      %s277 = sadd.s32 %s275, %s276
      %s278 = smul.addr %s277, 4
      %s279 = scalar_lea.vmem %s5, %s278
      %p280 = pneg %p146
      %p281 = pneg %p143
      %p282 = pneg %p172
      %p283 = pneg %p169
      %s284 = smul.u32 16, %s31
      %p285 = scmp.lt.s32.totalorder %s284, 159
      %s286 = scalar_select %p285, %s284, 159
      %s287 = smul.addr %s286, 8
      %s288 = scalar_lea.vmem %s6, %s287
      %s289 = smul.u32 16, %s31
      %p290 = scmp.lt.s32.totalorder %s289, 159
      %s291 = scalar_select %p290, %s289, 159
      %s292 = smul.addr %s291, 4
      %s293 = scalar_lea.vmem %s2, %s292
      %s294 = smul.u32 16, %s31
      %s295 = smul.u32 16, %s31
      %p296 = scmp.lt.s32.totalorder %s295, 159
      %s297 = scalar_select %p296, %s295, 159
      %s298 = smul.addr %s297, 8
      %s299 = scalar_lea.vmem %s3, %s298
      %s300 = smul.u32 16, %s31
      %s301 = sld [smem:[#allocation4 + %s31]]
      %p302 = scmp.lt.s32.totalorder %s301, 8
      %s303 = scalar_select %p302, %s301, 8
      %p304 = scmp.lt.s32.totalorder %s32, 0
      %s305 = scalar_select %p304, %s32, 0
      %s306 = smul.addr %s305, 64
      %s307 = smul.addr %s303, 64
      %s308 = sadd.s32 %s306, %s307
      %s309 = smul.addr %s308, 4
      %s310 = scalar_lea.vmem %s4, %s309
      %s311 = sld [smem:[#allocation4 + %s31]]
      %s312 = sld [smem:[#allocation4 + %s31]]
      %p313 = scmp.lt.s32.totalorder %s312, 8
      %s314 = scalar_select %p313, %s312, 8
      %p315 = scmp.lt.s32.totalorder %s32, 0
      %s316 = scalar_select %p315, %s32, 0
      %s317 = smul.addr %s316, 32
      %s318 = smul.addr %s314, 32
      %s319 = sadd.s32 %s317, %s318
      %s320 = smul.addr %s319, 4
      %s321 = scalar_lea.vmem %s5, %s320
      %s322 = sld [smem:[#allocation4 + %s31]]
      %s323 = smul.u32 16, %s31
      %p324 = scmp.lt.s32.totalorder %s323, 159
      %s325 = scalar_select %p324, %s323, 159
      %s326 = smul.addr %s325, 8
      %s327 = scalar_lea.vmem %s6, %s326
      %s328 = smul.u32 16, %s31
      %s330 = sld [smem:[#allocation5 + %s31]]
      %p331 = scmp.gt.s32.totalorder %s330, 0
      %p332 = scmp.eq.s32.totalorder %s32, 0
      %p333 = pnand %p331, %p332
      %p334 = pneg %p333
      // Predicated region
      $region37: #{llama_moe_forward.1} parent=35 // pred_check
        _
      $region38: #{llama_moe_forward.1} parent=35 // pred_check_branch
        %336 = sbr.rel (%p333) target = $region40
      $region39: #{llama_moe_forward.1} parent=35 // pred_region
        %337 = vst [vmem:[#allocation2] sm:$0xff] 0.0
        %338 = vst [vmem:[#allocation2 + $0x8] sm:$0xff] 0.0
        %339 = vst [vmem:[#allocation2 + $0x10] sm:$0xff] 0.0
        %340 = vst [vmem:[#allocation2 + $0x18] sm:$0xff] 0.0
        %341 = vst [vmem:[#allocation2 + $0x20] sm:$0xff] 0.0
        %342 = vst [vmem:[#allocation2 + $0x28] sm:$0xff] 0.0
        %343 = vst [vmem:[#allocation2 + $0x30] sm:$0xff] 0.0
        %344 = vst [vmem:[#allocation2 + $0x38] sm:$0xff] 0.0
        %345 = vst [vmem:[#allocation2 + $0x40] sm:$0xff] 0.0
        %346 = vst [vmem:[#allocation2 + $0x48] sm:$0xff] 0.0
        %347 = vst [vmem:[#allocation2 + $0x50] sm:$0xff] 0.0
        %348 = vst [vmem:[#allocation2 + $0x58] sm:$0xff] 0.0
        %349 = vst [vmem:[#allocation2 + $0x60] sm:$0xff] 0.0
        %350 = vst [vmem:[#allocation2 + $0x68] sm:$0xff] 0.0
        %351 = vst [vmem:[#allocation2 + $0x70] sm:$0xff] 0.0
        %352 = vst [vmem:[#allocation2 + $0x78] sm:$0xff] 0.0
      $region40: #{llama_moe_forward.1} parent=35 // pred_fallthru
        _
      // Predicated region
      $region41: #{llama_moe_forward.1} parent=35 // pred_check
        %p353 = pneg %p331
      $region42: #{llama_moe_forward.1} parent=35 // pred_check_branch
        %355 = sbr.rel (%p353) target = $region44
      $region43: #{llama_moe_forward.1} parent=35 // pred_region
        %v356 = vld [vmem:[%s293] sm:$0xf]
        %v357 = vld [vmem:[%s293 + $0x4] sm:$0xf]
        %v358 = vld [vmem:[%s293 + $0x8] sm:$0xf]
        %v359 = vld [vmem:[%s293 + $0xc] sm:$0xf]
        %v360 = vld [vmem:[%s293 + $0x10] sm:$0xf]
        %v361 = vld [vmem:[%s293 + $0x14] sm:$0xf]
        %v362 = vld [vmem:[%s293 + $0x18] sm:$0xf]
        %v363 = vld [vmem:[%s293 + $0x1c] sm:$0xf]
        %v364 = vld [vmem:[%s293 + $0x20] sm:$0xf]
        %v365 = vld [vmem:[%s293 + $0x24] sm:$0xf]
        %v366 = vld [vmem:[%s293 + $0x28] sm:$0xf]
        %v367 = vld [vmem:[%s293 + $0x2c] sm:$0xf]
        %v368 = vld [vmem:[%s293 + $0x30] sm:$0xf]
        %v369 = vld [vmem:[%s293 + $0x34] sm:$0xf]
        %v370 = vld [vmem:[%s293 + $0x38] sm:$0xf]
        %v371 = vld [vmem:[%s293 + $0x3c] sm:$0xf]
        %v372 = vld [vmem:[%s310] sm:$0xff]
        %v373 = vld [vmem:[%s310 + $0x8] sm:$0xff]
        %v374 = vld [vmem:[%s310 + $0x10] sm:$0xff]
        %v375 = vld [vmem:[%s310 + $0x18] sm:$0xff]
        %v376 = vld [vmem:[%s310 + $0x20] sm:$0xff]
        %v377 = vld [vmem:[%s310 + $0x28] sm:$0xff]
        %v378 = vld [vmem:[%s310 + $0x30] sm:$0xff]
        %v379 = vld [vmem:[%s310 + $0x38] sm:$0xff]
        %v380 = vld [vmem:[%s310 + $0x40] sm:$0xff]
        %v381 = vld [vmem:[%s310 + $0x48] sm:$0xff]
        %v382 = vld [vmem:[%s310 + $0x50] sm:$0xff]
        %v383 = vld [vmem:[%s310 + $0x58] sm:$0xff]
        %v384 = vld [vmem:[%s310 + $0x60] sm:$0xff]
        %v385 = vld [vmem:[%s310 + $0x68] sm:$0xff]
        %v386 = vld [vmem:[%s310 + $0x70] sm:$0xff]
        %v387 = vld [vmem:[%s310 + $0x78] sm:$0xff]
        %v388 = vld [vmem:[%s310 + $0x80] sm:$0xff]
        %v389 = vld [vmem:[%s310 + $0x88] sm:$0xff]
        %v390 = vld [vmem:[%s310 + $0x90] sm:$0xff]
        %v391 = vld [vmem:[%s310 + $0x98] sm:$0xff]
        %v392 = vld [vmem:[%s310 + $0xa0] sm:$0xff]
        %v393 = vld [vmem:[%s310 + $0xa8] sm:$0xff]
        %v394 = vld [vmem:[%s310 + $0xb0] sm:$0xff]
        %v395 = vld [vmem:[%s310 + $0xb8] sm:$0xff]
        %v396 = vld [vmem:[%s310 + $0xc0] sm:$0xff]
        %v397 = vld [vmem:[%s310 + $0xc8] sm:$0xff]
        %v398 = vld [vmem:[%s310 + $0xd0] sm:$0xff]
        %v399 = vld [vmem:[%s310 + $0xd8] sm:$0xff]
        %v400 = vld [vmem:[%s310 + $0xe0] sm:$0xff]
        %v401 = vld [vmem:[%s310 + $0xe8] sm:$0xff]
        %v402 = vld [vmem:[%s310 + $0xf0] sm:$0xff]
        %v403 = vld [vmem:[%s310 + $0xf8] sm:$0xff]
        %v420 = vunpack.c.l.b16 %v356
        %v421 = vunpack.c.l.b16 %v357
        %v422 = vunpack.c.l.b16 %v358
        %v423 = vunpack.c.l.b16 %v359
        %v424 = vunpack.c.l.b16 %v360
        %v425 = vunpack.c.l.b16 %v361
        %v426 = vunpack.c.l.b16 %v362
        %v427 = vunpack.c.l.b16 %v363
        %v428 = vunpack.c.l.b16 %v364
        %v429 = vunpack.c.l.b16 %v365
        %v430 = vunpack.c.l.b16 %v366
        %v431 = vunpack.c.l.b16 %v367
        %v432 = vunpack.c.l.b16 %v368
        %v433 = vunpack.c.l.b16 %v369
        %v434 = vunpack.c.l.b16 %v370
        %v435 = vunpack.c.l.b16 %v371
        %v436 = vpack.c.b16 %v421, %v420
        %v437 = vpack.c.b16 %v423, %v422
        %v438 = vpack.c.b16 %v425, %v424
        %v439 = vpack.c.b16 %v427, %v426
        %v440 = vpack.c.b16 %v429, %v428
        %v441 = vpack.c.b16 %v431, %v430
        %v442 = vpack.c.b16 %v433, %v432
        %v443 = vpack.c.b16 %v435, %v434
        %v484 = vunpack.c.l.b16 %v372
        %v485 = vunpack.c.h.b16 %v372
        %v486 = vunpack.c.l.b16 %v373
        %v487 = vunpack.c.h.b16 %v373
        %v488 = vunpack.c.l.b16 %v374
        %v489 = vunpack.c.h.b16 %v374
        %v490 = vunpack.c.l.b16 %v375
        %v491 = vunpack.c.h.b16 %v375
        %v492 = vunpack.c.l.b16 %v376
        %v493 = vunpack.c.h.b16 %v376
        %v494 = vunpack.c.l.b16 %v377
        %v495 = vunpack.c.h.b16 %v377
        %v496 = vunpack.c.l.b16 %v378
        %v497 = vunpack.c.h.b16 %v378
        %v498 = vunpack.c.l.b16 %v379
        %v499 = vunpack.c.h.b16 %v379
        %v500 = vunpack.c.l.b16 %v380
        %v501 = vunpack.c.h.b16 %v380
        %v502 = vunpack.c.l.b16 %v381
        %v503 = vunpack.c.h.b16 %v381
        %v504 = vunpack.c.l.b16 %v382
        %v505 = vunpack.c.h.b16 %v382
        %v506 = vunpack.c.l.b16 %v383
        %v507 = vunpack.c.h.b16 %v383
        %v508 = vunpack.c.l.b16 %v384
        %v509 = vunpack.c.h.b16 %v384
        %v510 = vunpack.c.l.b16 %v385
        %v511 = vunpack.c.h.b16 %v385
        %v512 = vunpack.c.l.b16 %v386
        %v513 = vunpack.c.h.b16 %v386
        %v514 = vunpack.c.l.b16 %v387
        %v515 = vunpack.c.h.b16 %v387
        %v516 = vunpack.c.l.b16 %v388
        %v517 = vunpack.c.h.b16 %v388
        %v518 = vunpack.c.l.b16 %v389
        %v519 = vunpack.c.h.b16 %v389
        %v520 = vunpack.c.l.b16 %v390
        %v521 = vunpack.c.h.b16 %v390
        %v522 = vunpack.c.l.b16 %v391
        %v523 = vunpack.c.h.b16 %v391
        %v524 = vunpack.c.l.b16 %v392
        %v525 = vunpack.c.h.b16 %v392
        %v526 = vunpack.c.l.b16 %v393
        %v527 = vunpack.c.h.b16 %v393
        %v528 = vunpack.c.l.b16 %v394
        %v529 = vunpack.c.h.b16 %v394
        %v530 = vunpack.c.l.b16 %v395
        %v531 = vunpack.c.h.b16 %v395
        %v532 = vunpack.c.l.b16 %v396
        %v533 = vunpack.c.h.b16 %v396
        %v534 = vunpack.c.l.b16 %v397
        %v535 = vunpack.c.h.b16 %v397
        %v536 = vunpack.c.l.b16 %v398
        %v537 = vunpack.c.h.b16 %v398
        %v538 = vunpack.c.l.b16 %v399
        %v539 = vunpack.c.h.b16 %v399
        %v540 = vunpack.c.l.b16 %v400
        %v541 = vunpack.c.h.b16 %v400
        %v542 = vunpack.c.l.b16 %v401
        %v543 = vunpack.c.h.b16 %v401
        %v544 = vunpack.c.l.b16 %v402
        %v545 = vunpack.c.h.b16 %v402
        %v546 = vunpack.c.l.b16 %v403
        %v547 = vunpack.c.h.b16 %v403
        %v548 = vpack.c.b16 %v488, %v484
        %v549 = vpack.c.b16 %v489, %v485
        %v550 = vpack.c.b16 %v490, %v486
        %v551 = vpack.c.b16 %v491, %v487
        %v552 = vpack.c.b16 %v496, %v492
        %v553 = vpack.c.b16 %v497, %v493
        %v554 = vpack.c.b16 %v498, %v494
        %v555 = vpack.c.b16 %v499, %v495
        %v556 = vpack.c.b16 %v504, %v500
        %v557 = vpack.c.b16 %v505, %v501
        %v558 = vpack.c.b16 %v506, %v502
        %v559 = vpack.c.b16 %v507, %v503
        %v560 = vpack.c.b16 %v512, %v508
        %v561 = vpack.c.b16 %v513, %v509
        %v562 = vpack.c.b16 %v514, %v510
        %v563 = vpack.c.b16 %v515, %v511
        %v564 = vpack.c.b16 %v520, %v516
        %v565 = vpack.c.b16 %v521, %v517
        %v566 = vpack.c.b16 %v522, %v518
        %v567 = vpack.c.b16 %v523, %v519
        %v568 = vpack.c.b16 %v528, %v524
        %v569 = vpack.c.b16 %v529, %v525
        %v570 = vpack.c.b16 %v530, %v526
        %v571 = vpack.c.b16 %v531, %v527
        %v572 = vpack.c.b16 %v536, %v532
        %v573 = vpack.c.b16 %v537, %v533
        %v574 = vpack.c.b16 %v538, %v534
        %v575 = vpack.c.b16 %v539, %v535
        %v576 = vpack.c.b16 %v544, %v540
        %v577 = vpack.c.b16 %v545, %v541
        %v578 = vpack.c.b16 %v546, %v542
        %v579 = vpack.c.b16 %v547, %v543
        %612 = vmatprep.subr.bf16.mxu0 %v549
        %613 = vmatpush1.bf16.msra.mxu0 %v548
        %614 = vmatprep.subr.bf16.mxu0 %v553
        %615 = vmatpush1.bf16.msra.mxu0 %v552
        %616 = vmatprep.subr.bf16.mxu0 %v557
        %617 = vmatpush1.bf16.msra.mxu0 %v556
        %618 = vmatprep.subr.bf16.mxu0 %v561
        %619 = vmatpush1.bf16.msra.mxu0 %v560
        %620 = vmatprep.subr.bf16.mxu0 %v565
        %621 = vmatpush1.bf16.msra.mxu0 %v564
        %622 = vmatprep.subr.bf16.mxu0 %v569
        %623 = vmatpush1.bf16.msra.mxu0 %v568
        %624 = vmatprep.subr.bf16.mxu0 %v573
        %625 = vmatpush1.bf16.msra.mxu0 %v572
        %626 = vmatprep.subr.bf16.mxu0 %v577
        %627 = vmatpush1.bf16.msra.mxu0 %v576
        %628 = vmatprep.subr.bf16.mxu0 0
        %629 = vmatpush1.bf16.msra.mxu0 0
        %630 = vmatprep.subr.bf16.mxu0 0
        %631 = vmatpush1.bf16.msra.mxu0 0
        %632 = vmatprep.subr.bf16.mxu0 0
        %633 = vmatpush1.bf16.msra.mxu0 0
        %634 = vmatprep.subr.bf16.mxu0 0
        %635 = vmatpush1.bf16.msra.mxu0 0
        %636 = vmatprep.subr.bf16.mxu0 0
        %637 = vmatpush1.bf16.msra.mxu0 0
        %638 = vmatprep.subr.bf16.mxu0 0
        %639 = vmatpush1.bf16.msra.mxu0 0
        %640 = vmatprep.subr.bf16.mxu0 0
        %641 = vmatpush1.bf16.msra.mxu0 0
        %642 = vmatprep.subr.bf16.mxu0 0
        %643 = vmatpush1.bf16.msra.mxu0 0
        %644 = vmatprep.mubr.bf16.mxu0 0
        %645 = vmatmul.mubr.bf16.gmra.mrb[0].mxu0 %v436
        %v646 = vpop.f32.mrb[0].mxu0
        %v647 = vadd.f32 0.0, %v646
        %v648 = vpop.f32.mrb[0].mxu0
        %v649 = vadd.f32 0.0, %v648
        %v650 = vpop.f32.mrb[0].mxu0
        %v651 = vadd.f32 0.0, %v650
        %v652 = vpop.f32.mrb[0].mxu0
        %v653 = vadd.f32 0.0, %v652
        %654 = vmatprep.mubr.bf16.mxu0 0
        %655 = vmatmul.mubr.bf16.gmra.mrb[0].mxu0 %v437
        %v656 = vpop.f32.mrb[0].mxu0
        %v657 = vadd.f32 0.0, %v656
        %v658 = vpop.f32.mrb[0].mxu0
        %v659 = vadd.f32 0.0, %v658
        %v660 = vpop.f32.mrb[0].mxu0
        %v661 = vadd.f32 0.0, %v660
        %v662 = vpop.f32.mrb[0].mxu0
        %v663 = vadd.f32 0.0, %v662
        %664 = vmatprep.mubr.bf16.mxu0 0
        %665 = vmatmul.mubr.bf16.gmra.mrb[0].mxu0 %v438
        %v666 = vpop.f32.mrb[0].mxu0
        %v667 = vadd.f32 0.0, %v666
        %v668 = vpop.f32.mrb[0].mxu0
        %v669 = vadd.f32 0.0, %v668
        %v670 = vpop.f32.mrb[0].mxu0
        %v671 = vadd.f32 0.0, %v670
        %v672 = vpop.f32.mrb[0].mxu0
        %v673 = vadd.f32 0.0, %v672
        %674 = vmatprep.mubr.bf16.mxu0 0
        %675 = vmatmul.mubr.bf16.gmra.mrb[0].mxu0 %v439
        %v676 = vpop.f32.mrb[0].mxu0
        %v677 = vadd.f32 0.0, %v676
        %v678 = vpop.f32.mrb[0].mxu0
        %v679 = vadd.f32 0.0, %v678
        %v680 = vpop.f32.mrb[0].mxu0
        %v681 = vadd.f32 0.0, %v680
        %v682 = vpop.f32.mrb[0].mxu0
        %v683 = vadd.f32 0.0, %v682
        %684 = vmatprep.mubr.bf16.mxu0 0
        %685 = vmatmul.mubr.bf16.gmra.mrb[0].mxu0 %v440
        %v686 = vpop.f32.mrb[0].mxu0
        %v687 = vadd.f32 0.0, %v686
        %v688 = vpop.f32.mrb[0].mxu0
        %v689 = vadd.f32 0.0, %v688
        %v690 = vpop.f32.mrb[0].mxu0
        %v691 = vadd.f32 0.0, %v690
        %v692 = vpop.f32.mrb[0].mxu0
        %v693 = vadd.f32 0.0, %v692
        %694 = vmatprep.mubr.bf16.mxu0 0
        %695 = vmatmul.mubr.bf16.gmra.mrb[0].mxu0 %v441
        %v696 = vpop.f32.mrb[0].mxu0
        %v697 = vadd.f32 0.0, %v696
        %v698 = vpop.f32.mrb[0].mxu0
        %v699 = vadd.f32 0.0, %v698
        %v700 = vpop.f32.mrb[0].mxu0
        %v701 = vadd.f32 0.0, %v700
        %v702 = vpop.f32.mrb[0].mxu0
        %v703 = vadd.f32 0.0, %v702
        %704 = vmatprep.mubr.bf16.mxu0 0
        %705 = vmatmul.mubr.bf16.gmra.mrb[0].mxu0 %v442
        %v706 = vpop.f32.mrb[0].mxu0
        %v707 = vadd.f32 0.0, %v706
        %v708 = vpop.f32.mrb[0].mxu0
        %v709 = vadd.f32 0.0, %v708
        %v710 = vpop.f32.mrb[0].mxu0
        %v711 = vadd.f32 0.0, %v710
        %v712 = vpop.f32.mrb[0].mxu0
        %v713 = vadd.f32 0.0, %v712
        %714 = vmatprep.mubr.bf16.mxu0 0
        %715 = vmatmul.mubr.bf16.gmra.mrb[0].mxu0 %v443
        %v716 = vpop.f32.mrb[0].mxu0
        %v717 = vadd.f32 0.0, %v716
        %v718 = vpop.f32.mrb[0].mxu0
        %v719 = vadd.f32 0.0, %v718
        %v720 = vpop.f32.mrb[0].mxu0
        %v721 = vadd.f32 0.0, %v720
        %v722 = vpop.f32.mrb[0].mxu0
        %v723 = vadd.f32 0.0, %v722
        %724 = vdwg.mxu0
        %725 = vmatprep.subr.bf16.mxu0 %v551
        %726 = vmatpush1.bf16.msra.mxu0 %v550
        %727 = vmatprep.subr.bf16.mxu0 %v555
        %728 = vmatpush1.bf16.msra.mxu0 %v554
        %729 = vmatprep.subr.bf16.mxu0 %v559
        %730 = vmatpush1.bf16.msra.mxu0 %v558
        %731 = vmatprep.subr.bf16.mxu0 %v563
        %732 = vmatpush1.bf16.msra.mxu0 %v562
        %733 = vmatprep.subr.bf16.mxu0 %v567
        %734 = vmatpush1.bf16.msra.mxu0 %v566
        %735 = vmatprep.subr.bf16.mxu0 %v571
        %736 = vmatpush1.bf16.msra.mxu0 %v570
        %737 = vmatprep.subr.bf16.mxu0 %v575
        %738 = vmatpush1.bf16.msra.mxu0 %v574
        %739 = vmatprep.subr.bf16.mxu0 %v579
        %740 = vmatpush1.bf16.msra.mxu0 %v578
        %741 = vmatprep.subr.bf16.mxu0 0
        %742 = vmatpush1.bf16.msra.mxu0 0
        %743 = vmatprep.subr.bf16.mxu0 0
        %744 = vmatpush1.bf16.msra.mxu0 0
        %745 = vmatprep.subr.bf16.mxu0 0
        %746 = vmatpush1.bf16.msra.mxu0 0
        %747 = vmatprep.subr.bf16.mxu0 0
        %748 = vmatpush1.bf16.msra.mxu0 0
        %749 = vmatprep.subr.bf16.mxu0 0
        %750 = vmatpush1.bf16.msra.mxu0 0
        %751 = vmatprep.subr.bf16.mxu0 0
        %752 = vmatpush1.bf16.msra.mxu0 0
        %753 = vmatprep.subr.bf16.mxu0 0
        %754 = vmatpush1.bf16.msra.mxu0 0
        %755 = vmatprep.subr.bf16.mxu0 0
        %756 = vmatpush1.bf16.msra.mxu0 0
        %757 = vmatprep.mubr.bf16.mxu0 0
        %758 = vmatmul.mubr.bf16.gmra.mrb[0].mxu0 %v436
        %v759 = vpop.f32.mrb[0].mxu0
        %v760 = vadd.f32 0.0, %v759
        %v761 = vpop.f32.mrb[0].mxu0
        %v762 = vadd.f32 0.0, %v761
        %v763 = vpop.f32.mrb[0].mxu0
        %v764 = vadd.f32 0.0, %v763
        %v765 = vpop.f32.mrb[0].mxu0
        %v766 = vadd.f32 0.0, %v765
        %767 = vmatprep.mubr.bf16.mxu0 0
        %768 = vmatmul.mubr.bf16.gmra.mrb[0].mxu0 %v437
        %v769 = vpop.f32.mrb[0].mxu0
        %v770 = vadd.f32 0.0, %v769
        %v771 = vpop.f32.mrb[0].mxu0
        %v772 = vadd.f32 0.0, %v771
        %v773 = vpop.f32.mrb[0].mxu0
        %v774 = vadd.f32 0.0, %v773
        %v775 = vpop.f32.mrb[0].mxu0
        %v776 = vadd.f32 0.0, %v775
        %777 = vmatprep.mubr.bf16.mxu0 0
        %778 = vmatmul.mubr.bf16.gmra.mrb[0].mxu0 %v438
        %v779 = vpop.f32.mrb[0].mxu0
        %v780 = vadd.f32 0.0, %v779
        %v781 = vpop.f32.mrb[0].mxu0
        %v782 = vadd.f32 0.0, %v781
        %v783 = vpop.f32.mrb[0].mxu0
        %v784 = vadd.f32 0.0, %v783
        %v785 = vpop.f32.mrb[0].mxu0
        %v786 = vadd.f32 0.0, %v785
        %787 = vmatprep.mubr.bf16.mxu0 0
        %788 = vmatmul.mubr.bf16.gmra.mrb[0].mxu0 %v439
        %v789 = vpop.f32.mrb[0].mxu0
        %v790 = vadd.f32 0.0, %v789
        %v791 = vpop.f32.mrb[0].mxu0
        %v792 = vadd.f32 0.0, %v791
        %v793 = vpop.f32.mrb[0].mxu0
        %v794 = vadd.f32 0.0, %v793
        %v795 = vpop.f32.mrb[0].mxu0
        %v796 = vadd.f32 0.0, %v795
        %797 = vmatprep.mubr.bf16.mxu0 0
        %798 = vmatmul.mubr.bf16.gmra.mrb[0].mxu0 %v440
        %v799 = vpop.f32.mrb[0].mxu0
        %v800 = vadd.f32 0.0, %v799
        %v801 = vpop.f32.mrb[0].mxu0
        %v802 = vadd.f32 0.0, %v801
        %v803 = vpop.f32.mrb[0].mxu0
        %v804 = vadd.f32 0.0, %v803
        %v805 = vpop.f32.mrb[0].mxu0
        %v806 = vadd.f32 0.0, %v805
        %807 = vmatprep.mubr.bf16.mxu0 0
        %808 = vmatmul.mubr.bf16.gmra.mrb[0].mxu0 %v441
        %v809 = vpop.f32.mrb[0].mxu0
        %v810 = vadd.f32 0.0, %v809
        %v811 = vpop.f32.mrb[0].mxu0
        %v812 = vadd.f32 0.0, %v811
        %v813 = vpop.f32.mrb[0].mxu0
        %v814 = vadd.f32 0.0, %v813
        %v815 = vpop.f32.mrb[0].mxu0
        %v816 = vadd.f32 0.0, %v815
        %817 = vmatprep.mubr.bf16.mxu0 0
        %818 = vmatmul.mubr.bf16.gmra.mrb[0].mxu0 %v442
        %v819 = vpop.f32.mrb[0].mxu0
        %v820 = vadd.f32 0.0, %v819
        %v821 = vpop.f32.mrb[0].mxu0
        %v822 = vadd.f32 0.0, %v821
        %v823 = vpop.f32.mrb[0].mxu0
        %v824 = vadd.f32 0.0, %v823
        %v825 = vpop.f32.mrb[0].mxu0
        %v826 = vadd.f32 0.0, %v825
        %827 = vmatprep.mubr.bf16.mxu0 0
        %828 = vmatmul.mubr.bf16.gmra.mrb[0].mxu0 %v443
        %v829 = vpop.f32.mrb[0].mxu0
        %v830 = vadd.f32 0.0, %v829
        %v831 = vpop.f32.mrb[0].mxu0
        %v832 = vadd.f32 0.0, %v831
        %v833 = vpop.f32.mrb[0].mxu0
        %v834 = vadd.f32 0.0, %v833
        %v835 = vpop.f32.mrb[0].mxu0
        %v836 = vadd.f32 0.0, %v835
        %837 = vdwg.mxu0
        %v838 = vxor.u32 %v647, 2147483648
        %v839 = vxor.u32 %v649, 2147483648
        %v840 = vxor.u32 %v651, 2147483648
        %v841 = vxor.u32 %v653, 2147483648
        %v842 = vxor.u32 %v657, 2147483648
        %v843 = vxor.u32 %v659, 2147483648
        %v844 = vxor.u32 %v661, 2147483648
        %v845 = vxor.u32 %v663, 2147483648
        %v846 = vxor.u32 %v667, 2147483648
        %v847 = vxor.u32 %v669, 2147483648
        %v848 = vxor.u32 %v671, 2147483648
        %v849 = vxor.u32 %v673, 2147483648
        %v850 = vxor.u32 %v677, 2147483648
        %v851 = vxor.u32 %v679, 2147483648
        %v852 = vxor.u32 %v681, 2147483648
        %v853 = vxor.u32 %v683, 2147483648
        %v854 = vxor.u32 %v687, 2147483648
        %v855 = vxor.u32 %v689, 2147483648
        %v856 = vxor.u32 %v691, 2147483648
        %v857 = vxor.u32 %v693, 2147483648
        %v858 = vxor.u32 %v697, 2147483648
        %v859 = vxor.u32 %v699, 2147483648
        %v860 = vxor.u32 %v701, 2147483648
        %v861 = vxor.u32 %v703, 2147483648
        %v862 = vxor.u32 %v707, 2147483648
        %v863 = vxor.u32 %v709, 2147483648
        %v864 = vxor.u32 %v711, 2147483648
        %v865 = vxor.u32 %v713, 2147483648
        %v866 = vxor.u32 %v717, 2147483648
        %v867 = vxor.u32 %v719, 2147483648
        %v868 = vxor.u32 %v721, 2147483648
        %v869 = vxor.u32 %v723, 2147483648
        %v870 = vmul.f32 %v838, 1.442695
        %v871 = vpow.pop %v870
        %v872 = vmul.f32 %v839, 1.442695
        %v873 = vpow.pop %v872
        %v874 = vmul.f32 %v840, 1.442695
        %v875 = vpow.pop %v874
        %v876 = vmul.f32 %v841, 1.442695
        %v877 = vpow.pop %v876
        %v878 = vmul.f32 %v842, 1.442695
        %v879 = vpow.pop %v878
        %v880 = vmul.f32 %v843, 1.442695
        %v881 = vpow.pop %v880
        %v882 = vmul.f32 %v844, 1.442695
        %v883 = vpow.pop %v882
        %v884 = vmul.f32 %v845, 1.442695
        %v885 = vpow.pop %v884
        %v886 = vmul.f32 %v846, 1.442695
        %v887 = vpow.pop %v886
        %v888 = vmul.f32 %v847, 1.442695
        %v889 = vpow.pop %v888
        %v890 = vmul.f32 %v848, 1.442695
        %v891 = vpow.pop %v890
        %v892 = vmul.f32 %v849, 1.442695
        %v893 = vpow.pop %v892
        %v894 = vmul.f32 %v850, 1.442695
        %v895 = vpow.pop %v894
        %v896 = vmul.f32 %v851, 1.442695
        %v897 = vpow.pop %v896
        %v898 = vmul.f32 %v852, 1.442695
        %v899 = vpow.pop %v898
        %v900 = vmul.f32 %v853, 1.442695
        %v901 = vpow.pop %v900
        %v902 = vmul.f32 %v854, 1.442695
        %v903 = vpow.pop %v902
        %v904 = vmul.f32 %v855, 1.442695
        %v905 = vpow.pop %v904
        %v906 = vmul.f32 %v856, 1.442695
        %v907 = vpow.pop %v906
        %v908 = vmul.f32 %v857, 1.442695
        %v909 = vpow.pop %v908
        %v910 = vmul.f32 %v858, 1.442695
        %v911 = vpow.pop %v910
        %v912 = vmul.f32 %v859, 1.442695
        %v913 = vpow.pop %v912
        %v914 = vmul.f32 %v860, 1.442695
        %v915 = vpow.pop %v914
        %v916 = vmul.f32 %v861, 1.442695
        %v917 = vpow.pop %v916
        %v918 = vmul.f32 %v862, 1.442695
        %v919 = vpow.pop %v918
        %v920 = vmul.f32 %v863, 1.442695
        %v921 = vpow.pop %v920
        %v922 = vmul.f32 %v864, 1.442695
        %v923 = vpow.pop %v922
        %v924 = vmul.f32 %v865, 1.442695
        %v925 = vpow.pop %v924
        %v926 = vmul.f32 %v866, 1.442695
        %v927 = vpow.pop %v926
        %v928 = vmul.f32 %v867, 1.442695
        %v929 = vpow.pop %v928
        %v930 = vmul.f32 %v868, 1.442695
        %v931 = vpow.pop %v930
        %v932 = vmul.f32 %v869, 1.442695
        %v933 = vpow.pop %v932
        %v934 = vadd.f32 %v871, 1.0
        %v935 = vadd.f32 %v873, 1.0
        %v936 = vadd.f32 %v875, 1.0
        %v937 = vadd.f32 %v877, 1.0
        %v938 = vadd.f32 %v879, 1.0
        %v939 = vadd.f32 %v881, 1.0
        %v940 = vadd.f32 %v883, 1.0
        %v941 = vadd.f32 %v885, 1.0
        %v942 = vadd.f32 %v887, 1.0
        %v943 = vadd.f32 %v889, 1.0
        %v944 = vadd.f32 %v891, 1.0
        %v945 = vadd.f32 %v893, 1.0
        %v946 = vadd.f32 %v895, 1.0
        %v947 = vadd.f32 %v897, 1.0
        %v948 = vadd.f32 %v899, 1.0
        %v949 = vadd.f32 %v901, 1.0
        %v950 = vadd.f32 %v903, 1.0
        %v951 = vadd.f32 %v905, 1.0
        %v952 = vadd.f32 %v907, 1.0
        %v953 = vadd.f32 %v909, 1.0
        %v954 = vadd.f32 %v911, 1.0
        %v955 = vadd.f32 %v913, 1.0
        %v956 = vadd.f32 %v915, 1.0
        %v957 = vadd.f32 %v917, 1.0
        %v958 = vadd.f32 %v919, 1.0
        %v959 = vadd.f32 %v921, 1.0
        %v960 = vadd.f32 %v923, 1.0
        %v961 = vadd.f32 %v925, 1.0
        %v962 = vadd.f32 %v927, 1.0
        %v963 = vadd.f32 %v929, 1.0
        %v964 = vadd.f32 %v931, 1.0
        %v965 = vadd.f32 %v933, 1.0
        %v966 = vrcp.pop %v934
        %v967 = vmul.f32 1.0, %v966
        %v968 = vrcp.pop %v935
        %v969 = vmul.f32 1.0, %v968
        %v970 = vrcp.pop %v936
        %v971 = vmul.f32 1.0, %v970
        %v972 = vrcp.pop %v937
        %v973 = vmul.f32 1.0, %v972
        %v974 = vrcp.pop %v938
        %v975 = vmul.f32 1.0, %v974
        %v976 = vrcp.pop %v939
        %v977 = vmul.f32 1.0, %v976
        %v978 = vrcp.pop %v940
        %v979 = vmul.f32 1.0, %v978
        %v980 = vrcp.pop %v941
        %v981 = vmul.f32 1.0, %v980
        %v982 = vrcp.pop %v942
        %v983 = vmul.f32 1.0, %v982
        %v984 = vrcp.pop %v943
        %v985 = vmul.f32 1.0, %v984
        %v986 = vrcp.pop %v944
        %v987 = vmul.f32 1.0, %v986
        %v988 = vrcp.pop %v945
        %v989 = vmul.f32 1.0, %v988
        %v990 = vrcp.pop %v946
        %v991 = vmul.f32 1.0, %v990
        %v992 = vrcp.pop %v947
        %v993 = vmul.f32 1.0, %v992
        %v994 = vrcp.pop %v948
        %v995 = vmul.f32 1.0, %v994
        %v996 = vrcp.pop %v949
        %v997 = vmul.f32 1.0, %v996
        %v998 = vrcp.pop %v950
        %v999 = vmul.f32 1.0, %v998
        %v1000 = vrcp.pop %v951
        %v1001 = vmul.f32 1.0, %v1000
        %v1002 = vrcp.pop %v952
        %v1003 = vmul.f32 1.0, %v1002
        %v1004 = vrcp.pop %v953
        %v1005 = vmul.f32 1.0, %v1004
        %v1006 = vrcp.pop %v954
        %v1007 = vmul.f32 1.0, %v1006
        %v1008 = vrcp.pop %v955
        %v1009 = vmul.f32 1.0, %v1008
        %v1010 = vrcp.pop %v956
        %v1011 = vmul.f32 1.0, %v1010
        %v1012 = vrcp.pop %v957
        %v1013 = vmul.f32 1.0, %v1012
        %v1014 = vrcp.pop %v958
        %v1015 = vmul.f32 1.0, %v1014
        %v1016 = vrcp.pop %v959
        %v1017 = vmul.f32 1.0, %v1016
        %v1018 = vrcp.pop %v960
        %v1019 = vmul.f32 1.0, %v1018
        %v1020 = vrcp.pop %v961
        %v1021 = vmul.f32 1.0, %v1020
        %v1022 = vrcp.pop %v962
        %v1023 = vmul.f32 1.0, %v1022
        %v1024 = vrcp.pop %v963
        %v1025 = vmul.f32 1.0, %v1024
        %v1026 = vrcp.pop %v964
        %v1027 = vmul.f32 1.0, %v1026
        %v1028 = vrcp.pop %v965
        %v1029 = vmul.f32 1.0, %v1028
        %v1030 = vmul.f32 %v647, %v967
        %v1031 = vmul.f32 %v649, %v969
        %v1032 = vmul.f32 %v651, %v971
        %v1033 = vmul.f32 %v653, %v973
        %v1034 = vmul.f32 %v657, %v975
        %v1035 = vmul.f32 %v659, %v977
        %v1036 = vmul.f32 %v661, %v979
        %v1037 = vmul.f32 %v663, %v981
        %v1038 = vmul.f32 %v667, %v983
        %v1039 = vmul.f32 %v669, %v985
        %v1040 = vmul.f32 %v671, %v987
        %v1041 = vmul.f32 %v673, %v989
        %v1042 = vmul.f32 %v677, %v991
        %v1043 = vmul.f32 %v679, %v993
        %v1044 = vmul.f32 %v681, %v995
        %v1045 = vmul.f32 %v683, %v997
        %v1046 = vmul.f32 %v687, %v999
        %v1047 = vmul.f32 %v689, %v1001
        %v1048 = vmul.f32 %v691, %v1003
        %v1049 = vmul.f32 %v693, %v1005
        %v1050 = vmul.f32 %v697, %v1007
        %v1051 = vmul.f32 %v699, %v1009
        %v1052 = vmul.f32 %v701, %v1011
        %v1053 = vmul.f32 %v703, %v1013
        %v1054 = vmul.f32 %v707, %v1015
        %v1055 = vmul.f32 %v709, %v1017
        %v1056 = vmul.f32 %v711, %v1019
        %v1057 = vmul.f32 %v713, %v1021
        %v1058 = vmul.f32 %v717, %v1023
        %v1059 = vmul.f32 %v719, %v1025
        %v1060 = vmul.f32 %v721, %v1027
        %v1061 = vmul.f32 %v723, %v1029
        %v1062 = vmul.f32 %v1030, %v760
        %v1063 = vmul.f32 %v1031, %v762
        %v1064 = vmul.f32 %v1032, %v764
        %v1065 = vmul.f32 %v1033, %v766
        %v1066 = vmul.f32 %v1034, %v770
        %v1067 = vmul.f32 %v1035, %v772
        %v1068 = vmul.f32 %v1036, %v774
        %v1069 = vmul.f32 %v1037, %v776
        %v1070 = vmul.f32 %v1038, %v780
        %v1071 = vmul.f32 %v1039, %v782
        %v1072 = vmul.f32 %v1040, %v784
        %v1073 = vmul.f32 %v1041, %v786
        %v1074 = vmul.f32 %v1042, %v790
        %v1075 = vmul.f32 %v1043, %v792
        %v1076 = vmul.f32 %v1044, %v794
        %v1077 = vmul.f32 %v1045, %v796
        %v1078 = vmul.f32 %v1046, %v800
        %v1079 = vmul.f32 %v1047, %v802
        %v1080 = vmul.f32 %v1048, %v804
        %v1081 = vmul.f32 %v1049, %v806
        %v1082 = vmul.f32 %v1050, %v810
        %v1083 = vmul.f32 %v1051, %v812
        %v1084 = vmul.f32 %v1052, %v814
        %v1085 = vmul.f32 %v1053, %v816
        %v1086 = vmul.f32 %v1054, %v820
        %v1087 = vmul.f32 %v1055, %v822
        %v1088 = vmul.f32 %v1056, %v824
        %v1089 = vmul.f32 %v1057, %v826
        %v1090 = vmul.f32 %v1058, %v830
        %v1091 = vmul.f32 %v1059, %v832
        %v1092 = vmul.f32 %v1060, %v834
        %v1093 = vmul.f32 %v1061, %v836
        %v1094 = vld [vmem:[#allocation2] sm:$0xff]
        %v1095 = vld [vmem:[#allocation2 + $0x8] sm:$0xff]
        %v1096 = vld [vmem:[#allocation2 + $0x10] sm:$0xff]
        %v1097 = vld [vmem:[#allocation2 + $0x18] sm:$0xff]
        %v1098 = vld [vmem:[#allocation2 + $0x20] sm:$0xff]
        %v1099 = vld [vmem:[#allocation2 + $0x28] sm:$0xff]
        %v1100 = vld [vmem:[#allocation2 + $0x30] sm:$0xff]
        %v1101 = vld [vmem:[#allocation2 + $0x38] sm:$0xff]
        %v1102 = vld [vmem:[#allocation2 + $0x40] sm:$0xff]
        %v1103 = vld [vmem:[#allocation2 + $0x48] sm:$0xff]
        %v1104 = vld [vmem:[#allocation2 + $0x50] sm:$0xff]
        %v1105 = vld [vmem:[#allocation2 + $0x58] sm:$0xff]
        %v1106 = vld [vmem:[#allocation2 + $0x60] sm:$0xff]
        %v1107 = vld [vmem:[#allocation2 + $0x68] sm:$0xff]
        %v1108 = vld [vmem:[#allocation2 + $0x70] sm:$0xff]
        %v1109 = vld [vmem:[#allocation2 + $0x78] sm:$0xff]
        %v1110 = vpack.c.bf16 %v1064, %v1062
        %v1111 = vpack.c.bf16 %v1065, %v1063
        %v1112 = vpack.c.bf16 %v1068, %v1066
        %v1113 = vpack.c.bf16 %v1069, %v1067
        %v1114 = vpack.c.bf16 %v1072, %v1070
        %v1115 = vpack.c.bf16 %v1073, %v1071
        %v1116 = vpack.c.bf16 %v1076, %v1074
        %v1117 = vpack.c.bf16 %v1077, %v1075
        %v1118 = vpack.c.bf16 %v1080, %v1078
        %v1119 = vpack.c.bf16 %v1081, %v1079
        %v1120 = vpack.c.bf16 %v1084, %v1082
        %v1121 = vpack.c.bf16 %v1085, %v1083
        %v1122 = vpack.c.bf16 %v1088, %v1086
        %v1123 = vpack.c.bf16 %v1089, %v1087
        %v1124 = vpack.c.bf16 %v1092, %v1090
        %v1125 = vpack.c.bf16 %v1093, %v1091
        %v1126 = vld [vmem:[%s321] sm:$0xf]
        %v1127 = vld [vmem:[%s321 + $0x4] sm:$0xf]
        %v1128 = vld [vmem:[%s321 + $0x8] sm:$0xf]
        %v1129 = vld [vmem:[%s321 + $0xc] sm:$0xf]
        %v1130 = vld [vmem:[%s321 + $0x10] sm:$0xf]
        %v1131 = vld [vmem:[%s321 + $0x14] sm:$0xf]
        %v1132 = vld [vmem:[%s321 + $0x18] sm:$0xf]
        %v1133 = vld [vmem:[%s321 + $0x1c] sm:$0xf]
        %v1134 = vld [vmem:[%s321 + $0x20] sm:$0xf]
        %v1135 = vld [vmem:[%s321 + $0x24] sm:$0xf]
        %v1136 = vld [vmem:[%s321 + $0x28] sm:$0xf]
        %v1137 = vld [vmem:[%s321 + $0x2c] sm:$0xf]
        %v1138 = vld [vmem:[%s321 + $0x30] sm:$0xf]
        %v1139 = vld [vmem:[%s321 + $0x34] sm:$0xf]
        %v1140 = vld [vmem:[%s321 + $0x38] sm:$0xf]
        %v1141 = vld [vmem:[%s321 + $0x3c] sm:$0xf]
        %v1142 = vld [vmem:[%s321 + $0x40] sm:$0xf]
        %v1143 = vld [vmem:[%s321 + $0x44] sm:$0xf]
        %v1144 = vld [vmem:[%s321 + $0x48] sm:$0xf]
        %v1145 = vld [vmem:[%s321 + $0x4c] sm:$0xf]
        %v1146 = vld [vmem:[%s321 + $0x50] sm:$0xf]
        %v1147 = vld [vmem:[%s321 + $0x54] sm:$0xf]
        %v1148 = vld [vmem:[%s321 + $0x58] sm:$0xf]
        %v1149 = vld [vmem:[%s321 + $0x5c] sm:$0xf]
        %v1150 = vld [vmem:[%s321 + $0x60] sm:$0xf]
        %v1151 = vld [vmem:[%s321 + $0x64] sm:$0xf]
        %v1152 = vld [vmem:[%s321 + $0x68] sm:$0xf]
        %v1153 = vld [vmem:[%s321 + $0x6c] sm:$0xf]
        %v1154 = vld [vmem:[%s321 + $0x70] sm:$0xf]
        %v1155 = vld [vmem:[%s321 + $0x74] sm:$0xf]
        %v1156 = vld [vmem:[%s321 + $0x78] sm:$0xf]
        %v1157 = vld [vmem:[%s321 + $0x7c] sm:$0xf]
        %v1190 = vunpack.c.l.b16 %v1126
        %v1191 = vunpack.c.l.b16 %v1127
        %v1192 = vunpack.c.l.b16 %v1128
        %v1193 = vunpack.c.l.b16 %v1129
        %v1194 = vunpack.c.l.b16 %v1130
        %v1195 = vunpack.c.l.b16 %v1131
        %v1196 = vunpack.c.l.b16 %v1132
        %v1197 = vunpack.c.l.b16 %v1133
        %v1198 = vunpack.c.l.b16 %v1134
        %v1199 = vunpack.c.l.b16 %v1135
        %v1200 = vunpack.c.l.b16 %v1136
        %v1201 = vunpack.c.l.b16 %v1137
        %v1202 = vunpack.c.l.b16 %v1138
        %v1203 = vunpack.c.l.b16 %v1139
        %v1204 = vunpack.c.l.b16 %v1140
        %v1205 = vunpack.c.l.b16 %v1141
        %v1206 = vunpack.c.l.b16 %v1142
        %v1207 = vunpack.c.l.b16 %v1143
        %v1208 = vunpack.c.l.b16 %v1144
        %v1209 = vunpack.c.l.b16 %v1145
        %v1210 = vunpack.c.l.b16 %v1146
        %v1211 = vunpack.c.l.b16 %v1147
        %v1212 = vunpack.c.l.b16 %v1148
        %v1213 = vunpack.c.l.b16 %v1149
        %v1214 = vunpack.c.l.b16 %v1150
        %v1215 = vunpack.c.l.b16 %v1151
        %v1216 = vunpack.c.l.b16 %v1152
        %v1217 = vunpack.c.l.b16 %v1153
        %v1218 = vunpack.c.l.b16 %v1154
        %v1219 = vunpack.c.l.b16 %v1155
        %v1220 = vunpack.c.l.b16 %v1156
        %v1221 = vunpack.c.l.b16 %v1157
        %v1222 = vpack.c.b16 %v1191, %v1190
        %v1223 = vpack.c.b16 %v1193, %v1192
        %v1224 = vpack.c.b16 %v1195, %v1194
        %v1225 = vpack.c.b16 %v1197, %v1196
        %v1226 = vpack.c.b16 %v1199, %v1198
        %v1227 = vpack.c.b16 %v1201, %v1200
        %v1228 = vpack.c.b16 %v1203, %v1202
        %v1229 = vpack.c.b16 %v1205, %v1204
        %v1230 = vpack.c.b16 %v1207, %v1206
        %v1231 = vpack.c.b16 %v1209, %v1208
        %v1232 = vpack.c.b16 %v1211, %v1210
        %v1233 = vpack.c.b16 %v1213, %v1212
        %v1234 = vpack.c.b16 %v1215, %v1214
        %v1235 = vpack.c.b16 %v1217, %v1216
        %v1236 = vpack.c.b16 %v1219, %v1218
        %v1237 = vpack.c.b16 %v1221, %v1220
        %1254 = vmatprep.subr.bf16.mxu0 0
        %1255 = vmatpush1.bf16.msra.mxu0 %v1222
        %1256 = vmatprep.subr.bf16.mxu0 0
        %1257 = vmatpush1.bf16.msra.mxu0 %v1223
        %1258 = vmatprep.subr.bf16.mxu0 0
        %1259 = vmatpush1.bf16.msra.mxu0 %v1224
        %1260 = vmatprep.subr.bf16.mxu0 0
        %1261 = vmatpush1.bf16.msra.mxu0 %v1225
        %1262 = vmatprep.subr.bf16.mxu0 0
        %1263 = vmatpush1.bf16.msra.mxu0 %v1226
        %1264 = vmatprep.subr.bf16.mxu0 0
        %1265 = vmatpush1.bf16.msra.mxu0 %v1227
        %1266 = vmatprep.subr.bf16.mxu0 0
        %1267 = vmatpush1.bf16.msra.mxu0 %v1228
        %1268 = vmatprep.subr.bf16.mxu0 0
        %1269 = vmatpush1.bf16.msra.mxu0 %v1229
        %1270 = vmatprep.subr.bf16.mxu0 0
        %1271 = vmatpush1.bf16.msra.mxu0 %v1230
        %1272 = vmatprep.subr.bf16.mxu0 0
        %1273 = vmatpush1.bf16.msra.mxu0 %v1231
        %1274 = vmatprep.subr.bf16.mxu0 0
        %1275 = vmatpush1.bf16.msra.mxu0 %v1232
        %1276 = vmatprep.subr.bf16.mxu0 0
        %1277 = vmatpush1.bf16.msra.mxu0 %v1233
        %1278 = vmatprep.subr.bf16.mxu0 0
        %1279 = vmatpush1.bf16.msra.mxu0 %v1234
        %1280 = vmatprep.subr.bf16.mxu0 0
        %1281 = vmatpush1.bf16.msra.mxu0 %v1235
        %1282 = vmatprep.subr.bf16.mxu0 0
        %1283 = vmatpush1.bf16.msra.mxu0 %v1236
        %1284 = vmatprep.subr.bf16.mxu0 0
        %1285 = vmatpush1.bf16.msra.mxu0 %v1237
        %1286 = vmatprep.mubr.bf16.mxu0 %v1111
        %1287 = vmatmul.mubr.bf16.gmra.mrb[0].mxu0 %v1110
        %v1288 = vpop.f32.mrb[0].mxu0
        %v1289 = vadd.f32 0.0, %v1288
        %v1290 = vpop.f32.mrb[0].mxu0
        %v1291 = vpop.f32.mrb[0].mxu0
        %v1292 = vadd.f32 0.0, %v1291
        %v1293 = vpop.f32.mrb[0].mxu0
        %1294 = vmatprep.mubr.bf16.mxu0 %v1113
        %1295 = vmatmul.mubr.bf16.gmra.mrb[0].mxu0 %v1112
        %v1296 = vpop.f32.mrb[0].mxu0
        %v1297 = vadd.f32 0.0, %v1296
        %v1298 = vpop.f32.mrb[0].mxu0
        %v1299 = vpop.f32.mrb[0].mxu0
        %v1300 = vadd.f32 0.0, %v1299
        %v1301 = vpop.f32.mrb[0].mxu0
        %1302 = vmatprep.mubr.bf16.mxu0 %v1115
        %1303 = vmatmul.mubr.bf16.gmra.mrb[0].mxu0 %v1114
        %v1304 = vpop.f32.mrb[0].mxu0
        %v1305 = vadd.f32 0.0, %v1304
        %v1306 = vpop.f32.mrb[0].mxu0
        %v1307 = vpop.f32.mrb[0].mxu0
        %v1308 = vadd.f32 0.0, %v1307
        %v1309 = vpop.f32.mrb[0].mxu0
        %1310 = vmatprep.mubr.bf16.mxu0 %v1117
        %1311 = vmatmul.mubr.bf16.gmra.mrb[0].mxu0 %v1116
        %v1312 = vpop.f32.mrb[0].mxu0
        %v1313 = vadd.f32 0.0, %v1312
        %v1314 = vpop.f32.mrb[0].mxu0
        %v1315 = vpop.f32.mrb[0].mxu0
        %v1316 = vadd.f32 0.0, %v1315
        %v1317 = vpop.f32.mrb[0].mxu0
        %1318 = vmatprep.mubr.bf16.mxu0 %v1119
        %1319 = vmatmul.mubr.bf16.gmra.mrb[0].mxu0 %v1118
        %v1320 = vpop.f32.mrb[0].mxu0
        %v1321 = vadd.f32 0.0, %v1320
        %v1322 = vpop.f32.mrb[0].mxu0
        %v1323 = vpop.f32.mrb[0].mxu0
        %v1324 = vadd.f32 0.0, %v1323
        %v1325 = vpop.f32.mrb[0].mxu0
        %1326 = vmatprep.mubr.bf16.mxu0 %v1121
        %1327 = vmatmul.mubr.bf16.gmra.mrb[0].mxu0 %v1120
        %v1328 = vpop.f32.mrb[0].mxu0
        %v1329 = vadd.f32 0.0, %v1328
        %v1330 = vpop.f32.mrb[0].mxu0
        %v1331 = vpop.f32.mrb[0].mxu0
        %v1332 = vadd.f32 0.0, %v1331
        %v1333 = vpop.f32.mrb[0].mxu0
        %1334 = vmatprep.mubr.bf16.mxu0 %v1123
        %1335 = vmatmul.mubr.bf16.gmra.mrb[0].mxu0 %v1122
        %v1336 = vpop.f32.mrb[0].mxu0
        %v1337 = vadd.f32 0.0, %v1336
        %v1338 = vpop.f32.mrb[0].mxu0
        %v1339 = vpop.f32.mrb[0].mxu0
        %v1340 = vadd.f32 0.0, %v1339
        %v1341 = vpop.f32.mrb[0].mxu0
        %1342 = vmatprep.mubr.bf16.mxu0 %v1125
        %1343 = vmatmul.mubr.bf16.gmra.mrb[0].mxu0 %v1124
        %v1344 = vpop.f32.mrb[0].mxu0
        %v1345 = vadd.f32 0.0, %v1344
        %v1346 = vpop.f32.mrb[0].mxu0
        %v1347 = vpop.f32.mrb[0].mxu0
        %v1348 = vadd.f32 0.0, %v1347
        %v1349 = vpop.f32.mrb[0].mxu0
        %1350 = vdwg.mxu0
        %v1351 = vadd.f32 %v1094, %v1289
        %v1352 = vadd.f32 %v1095, %v1292
        %v1353 = vadd.f32 %v1096, %v1297
        %v1354 = vadd.f32 %v1097, %v1300
        %v1355 = vadd.f32 %v1098, %v1305
        %v1356 = vadd.f32 %v1099, %v1308
        %v1357 = vadd.f32 %v1100, %v1313
        %v1358 = vadd.f32 %v1101, %v1316
        %v1359 = vadd.f32 %v1102, %v1321
        %v1360 = vadd.f32 %v1103, %v1324
        %v1361 = vadd.f32 %v1104, %v1329
        %v1362 = vadd.f32 %v1105, %v1332
        %v1363 = vadd.f32 %v1106, %v1337
        %v1364 = vadd.f32 %v1107, %v1340
        %v1365 = vadd.f32 %v1108, %v1345
        %v1366 = vadd.f32 %v1109, %v1348
        %1367 = vst [vmem:[#allocation2] sm:$0xff] %v1351
        %1368 = vst [vmem:[#allocation2 + $0x8] sm:$0xff] %v1352
        %1369 = vst [vmem:[#allocation2 + $0x10] sm:$0xff] %v1353
        %1370 = vst [vmem:[#allocation2 + $0x18] sm:$0xff] %v1354
        %1371 = vst [vmem:[#allocation2 + $0x20] sm:$0xff] %v1355
        %1372 = vst [vmem:[#allocation2 + $0x28] sm:$0xff] %v1356
        %1373 = vst [vmem:[#allocation2 + $0x30] sm:$0xff] %v1357
        %1374 = vst [vmem:[#allocation2 + $0x38] sm:$0xff] %v1358
        %1375 = vst [vmem:[#allocation2 + $0x40] sm:$0xff] %v1359
        %1376 = vst [vmem:[#allocation2 + $0x48] sm:$0xff] %v1360
        %1377 = vst [vmem:[#allocation2 + $0x50] sm:$0xff] %v1361
        %1378 = vst [vmem:[#allocation2 + $0x58] sm:$0xff] %v1362
        %1379 = vst [vmem:[#allocation2 + $0x60] sm:$0xff] %v1363
        %1380 = vst [vmem:[#allocation2 + $0x68] sm:$0xff] %v1364
        %1381 = vst [vmem:[#allocation2 + $0x70] sm:$0xff] %v1365
        %1382 = vst [vmem:[#allocation2 + $0x78] sm:$0xff] %v1366
      $region44: #{llama_moe_forward.1} parent=35 // pred_fallthru
        _
      // Predicated region
      $region45: #{llama_moe_forward.1} parent=35 // pred_check
        %p1383 = pneg %p332
      $region46: #{llama_moe_forward.1} parent=35 // pred_check_branch
        %1385 = sbr.rel (%p1383) target = $region48
      $region47: #{llama_moe_forward.1} parent=35 // pred_region
        %v1386 = vld [vmem:[#allocation2] sm:$0xff]
        %v1387 = vld [vmem:[#allocation2 + $0x8] sm:$0xff]
        %v1388 = vld [vmem:[#allocation2 + $0x10] sm:$0xff]
        %v1389 = vld [vmem:[#allocation2 + $0x18] sm:$0xff]
        %v1390 = vld [vmem:[#allocation2 + $0x20] sm:$0xff]
        %v1391 = vld [vmem:[#allocation2 + $0x28] sm:$0xff]
        %v1392 = vld [vmem:[#allocation2 + $0x30] sm:$0xff]
        %v1393 = vld [vmem:[#allocation2 + $0x38] sm:$0xff]
        %v1394 = vld [vmem:[#allocation2 + $0x40] sm:$0xff]
        %v1395 = vld [vmem:[#allocation2 + $0x48] sm:$0xff]
        %v1396 = vld [vmem:[#allocation2 + $0x50] sm:$0xff]
        %v1397 = vld [vmem:[#allocation2 + $0x58] sm:$0xff]
        %v1398 = vld [vmem:[#allocation2 + $0x60] sm:$0xff]
        %v1399 = vld [vmem:[#allocation2 + $0x68] sm:$0xff]
        %v1400 = vld [vmem:[#allocation2 + $0x70] sm:$0xff]
        %v1401 = vld [vmem:[#allocation2 + $0x78] sm:$0xff]
        %v1402 = vld [vmem:[%s299] sm:$0xff]
        %v1403 = vld [vmem:[%s299 + $0x8] sm:$0xff]
        %v1404 = vld [vmem:[%s299 + $0x10] sm:$0xff]
        %v1405 = vld [vmem:[%s299 + $0x18] sm:$0xff]
        %v1406 = vld [vmem:[%s299 + $0x20] sm:$0xff]
        %v1407 = vld [vmem:[%s299 + $0x28] sm:$0xff]
        %v1408 = vld [vmem:[%s299 + $0x30] sm:$0xff]
        %v1409 = vld [vmem:[%s299 + $0x38] sm:$0xff]
        %v1410 = vld [vmem:[%s299 + $0x40] sm:$0xff]
        %v1411 = vld [vmem:[%s299 + $0x48] sm:$0xff]
        %v1412 = vld [vmem:[%s299 + $0x50] sm:$0xff]
        %v1413 = vld [vmem:[%s299 + $0x58] sm:$0xff]
        %v1414 = vld [vmem:[%s299 + $0x60] sm:$0xff]
        %v1415 = vld [vmem:[%s299 + $0x68] sm:$0xff]
        %v1416 = vld [vmem:[%s299 + $0x70] sm:$0xff]
        %v1417 = vld [vmem:[%s299 + $0x78] sm:$0xff]
        %1419 = vset.pattern.permute.xlu0 0
        %1420 = vperm.xlu0 %1419, %v1402
        %v1421 = vpop.permute.xlu0 %1420
        %1424 = vset.pattern.permute.xlu0 0
        %1425 = vperm.xlu0 %1424, %v1403
        %v1426 = vpop.permute.xlu0 %1425
        %1429 = vset.pattern.permute.xlu0 0
        %1430 = vperm.xlu0 %1429, %v1404
        %v1431 = vpop.permute.xlu0 %1430
        %1434 = vset.pattern.permute.xlu0 0
        %1435 = vperm.xlu0 %1434, %v1405
        %v1436 = vpop.permute.xlu0 %1435
        %1439 = vset.pattern.permute.xlu0 0
        %1440 = vperm.xlu0 %1439, %v1406
        %v1441 = vpop.permute.xlu0 %1440
        %1444 = vset.pattern.permute.xlu0 0
        %1445 = vperm.xlu0 %1444, %v1407
        %v1446 = vpop.permute.xlu0 %1445
        %1449 = vset.pattern.permute.xlu0 0
        %1450 = vperm.xlu0 %1449, %v1408
        %v1451 = vpop.permute.xlu0 %1450
        %1454 = vset.pattern.permute.xlu0 0
        %1455 = vperm.xlu0 %1454, %v1409
        %v1456 = vpop.permute.xlu0 %1455
        %1459 = vset.pattern.permute.xlu0 0
        %1460 = vperm.xlu0 %1459, %v1410
        %v1461 = vpop.permute.xlu0 %1460
        %1464 = vset.pattern.permute.xlu0 0
        %1465 = vperm.xlu0 %1464, %v1411
        %v1466 = vpop.permute.xlu0 %1465
        %1469 = vset.pattern.permute.xlu0 0
        %1470 = vperm.xlu0 %1469, %v1412
        %v1471 = vpop.permute.xlu0 %1470
        %1474 = vset.pattern.permute.xlu0 0
        %1475 = vperm.xlu0 %1474, %v1413
        %v1476 = vpop.permute.xlu0 %1475
        %1479 = vset.pattern.permute.xlu0 0
        %1480 = vperm.xlu0 %1479, %v1414
        %v1481 = vpop.permute.xlu0 %1480
        %1484 = vset.pattern.permute.xlu0 0
        %1485 = vperm.xlu0 %1484, %v1415
        %v1486 = vpop.permute.xlu0 %1485
        %1489 = vset.pattern.permute.xlu0 0
        %1490 = vperm.xlu0 %1489, %v1416
        %v1491 = vpop.permute.xlu0 %1490
        %1494 = vset.pattern.permute.xlu0 0
        %1495 = vperm.xlu0 %1494, %v1417
        %v1496 = vpop.permute.xlu0 %1495
        %v1498 = vmul.f32 %v1386, %v1421
        %v1499 = vmul.f32 %v1387, %v1426
        %v1500 = vmul.f32 %v1388, %v1431
        %v1501 = vmul.f32 %v1389, %v1436
        %v1502 = vmul.f32 %v1390, %v1441
        %v1503 = vmul.f32 %v1391, %v1446
        %v1504 = vmul.f32 %v1392, %v1451
        %v1505 = vmul.f32 %v1393, %v1456
        %v1506 = vmul.f32 %v1394, %v1461
        %v1507 = vmul.f32 %v1395, %v1466
        %v1508 = vmul.f32 %v1396, %v1471
        %v1509 = vmul.f32 %v1397, %v1476
        %v1510 = vmul.f32 %v1398, %v1481
        %v1511 = vmul.f32 %v1399, %v1486
        %v1512 = vmul.f32 %v1400, %v1491
        %v1513 = vmul.f32 %v1401, %v1496
        %s1514 = scalar_select %p331, 1, 0
        %v1515 = vstv %s1514
        %vm1516 = vcmp.eq.s32.totalorder %v1515, 1
        %v1517 = vsel %vm1516, %v1498, 0.0
        %v1518 = vsel %vm1516, %v1499, 0.0
        %v1519 = vsel %vm1516, %v1500, 0.0
        %v1520 = vsel %vm1516, %v1501, 0.0
        %v1521 = vsel %vm1516, %v1502, 0.0
        %v1522 = vsel %vm1516, %v1503, 0.0
        %v1523 = vsel %vm1516, %v1504, 0.0
        %v1524 = vsel %vm1516, %v1505, 0.0
        %v1525 = vsel %vm1516, %v1506, 0.0
        %v1526 = vsel %vm1516, %v1507, 0.0
        %v1527 = vsel %vm1516, %v1508, 0.0
        %v1528 = vsel %vm1516, %v1509, 0.0
        %v1529 = vsel %vm1516, %v1510, 0.0
        %v1530 = vsel %vm1516, %v1511, 0.0
        %v1531 = vsel %vm1516, %v1512, 0.0
        %v1532 = vsel %vm1516, %v1513, 0.0
        %1533 = vst [vmem:[%s327] sm:$0xff] %v1517
        %1534 = vst [vmem:[%s327 + $0x8] sm:$0xff] %v1518
        %1535 = vst [vmem:[%s327 + $0x10] sm:$0xff] %v1519
        %1536 = vst [vmem:[%s327 + $0x18] sm:$0xff] %v1520
        %1537 = vst [vmem:[%s327 + $0x20] sm:$0xff] %v1521
        %1538 = vst [vmem:[%s327 + $0x28] sm:$0xff] %v1522
        %1539 = vst [vmem:[%s327 + $0x30] sm:$0xff] %v1523
        %1540 = vst [vmem:[%s327 + $0x38] sm:$0xff] %v1524
        %1541 = vst [vmem:[%s327 + $0x40] sm:$0xff] %v1525
        %1542 = vst [vmem:[%s327 + $0x48] sm:$0xff] %v1526
        %1543 = vst [vmem:[%s327 + $0x50] sm:$0xff] %v1527
        %1544 = vst [vmem:[%s327 + $0x58] sm:$0xff] %v1528
        %1545 = vst [vmem:[%s327 + $0x60] sm:$0xff] %v1529
        %1546 = vst [vmem:[%s327 + $0x68] sm:$0xff] %v1530
        %1547 = vst [vmem:[%s327 + $0x70] sm:$0xff] %v1531
        %1548 = vst [vmem:[%s327 + $0x78] sm:$0xff] %v1532
      $region48: #{llama_moe_forward.1} parent=35 // pred_fallthru
        _
      %s1549 = smul.u32 16, %s31
      %p1550 = scmp.lt.s32.totalorder %s1549, 159
      %s1551 = scalar_select %p1550, %s1549, 159
      %s1552 = smul.addr %s1551, 8
      %s1553 = scalar_lea.vmem %s6, %s1552
      // Predicated region
      $region49: #{llama_moe_forward.1} parent=35 // pred_check
        %p1554 = pneg %p169
      $region50: #{llama_moe_forward.1} parent=35 // pred_check_branch
        %1556 = sbr.rel (%p1554) target = $region52
      $region51: #{llama_moe_forward.1} parent=35 // pred_region
        %s1557 = smul.u32 16, %s31
      $region52: #{llama_moe_forward.1} parent=35 // pred_fallthru
        _
    $region36: #{llama_moe_forward.1} parent=5 // pred_fallthru
      _
    %p1558 = scmp.le.s32.totalorder 2, %s22
    // Predicated region
    $region53: #{llama_moe_forward.1} parent=5 // pred_check
      %p1559 = pneg %p1558
    $region54: #{llama_moe_forward.1} parent=5 // pred_check_branch
      %1561 = sbr.rel (%p1559) target = $region56
    $region55: #{llama_moe_forward.1} parent=5 // pred_region
      %s1562 = ssub.s32 %s22, 2
      // Predicated region
      $region57: #{llama_moe_forward.1} parent=55 // pred_check
        %p1563 = pneg %p175
      $region58: #{llama_moe_forward.1} parent=55 // pred_check_branch
        %1565 = sbr.rel (%p1563) target = $region60
      $region59: #{llama_moe_forward.1} parent=55 // pred_region
        %s1566 = smul.u32 16, %s33
        %p1567 = scmp.lt.s32.totalorder %s1566, 159
        %s1568 = scalar_select %p1567, %s1566, 159
        %s1569 = smul.addr %s1568, 8
        %s1570 = scalar_lea.vmem %s6, %s1569
      $region60: #{llama_moe_forward.1} parent=55 // pred_fallthru
        _
    $region56: #{llama_moe_forward.1} parent=5 // pred_fallthru
      _
  $region6: #{llama_moe_forward.1} parent=0 // loop_footer
    %s26 = sadd.s32 1, %s22
  $region7: #{llama_moe_forward.1} parent=0 // loop_footer_branch
    %21 = sbr.rel target = $region3
  $region8: #{llama_moe_forward.1} parent=0 // loop_exit
    _

</llo_original>
